<compile_context>
chip_gen: v5e
topology: v5e:2x2
jax: 0.10.0
libtpu: 0.0.40
codegen_flags: <defaults>
</compile_context>

<pallas_src>
import jax
import jax.numpy as jnp
from jax.experimental import pallas as pl
from jax.experimental.pallas import tpu as pltpu


# ------------------------------ fused Pallas kernel ------------------------------

def _down_fused_kernel(x_ref, w1_ref, b1_ref, w2_ref, b2_ref, o_ref,
                       pad1_ref, pad2_ref):
    # x_ref   : (Hp, 2, Wp, 2*Cin)   one image, pool window on two non-lane axes
    # w*_ref  : (9, C_in, C_out)     conv weights with BN scale folded in (f32)
    # b*_ref  : (1, C_out)           folded BN shift (+ conv bias)
    # o_ref   : (1, Hp, Wp, Cout)
    # pad*_ref: ((Hp+2)*(Wp+2)+2, C) flattened zero-padded activations (VMEM scratch)
    hp, _, wp, c2 = x_ref.shape
    cin = c2 // 2
    cmid = w1_ref.shape[-1]
    cout = o_ref.shape[-1]
    wpad = wp + 2                       # padded row length
    ext = hp * wpad                     # extended rows: Wp valid + 2 garbage per row

    # Zero both padded scratches every step (halo must be 0; re-zeroing keeps the
    # "parallel" grid scheduling across cores correct).  Tiny arrays -> cheap.
    pad1_ref[...] = jnp.zeros_like(pad1_ref)
    pad2_ref[...] = jnp.zeros_like(pad2_ref)

    # ---- MaxPool2d(2), entirely in VMEM -------------------------------------
    xb = x_ref[...]                                          # (Hp, 2, Wp, 2*Cin)
    rmax = jnp.maximum(xb[:, 0], xb[:, 1])                   # max over the row pair
    pooled = jnp.maximum(rmax[..., :cin], rmax[..., cin:])   # max over the col pair

    # Stage the pooled interior into the flattened padded scratch.
    for y in range(hp):                                      # static unroll (Hp small)
        pad1_ref[pl.ds((y + 1) * wpad + 1, wp), :] = pooled[y]

    # Mask selecting the Wp valid columns of each extended row.
    xpos = jax.lax.broadcasted_iota(jnp.int32, (ext, 1), 0) % wpad
    valid = xpos < wp                                        # (ext, 1)

    def conv3x3_bn_relu(src_ref, w_ref, b_ref, out_c):
        # Nine contiguous row-slab taps of the flat padded scratch: no relayouts,
        # ~(Wp+2)/Wp extra MXU rows on an MXU that is otherwise nearly idle.
        acc = jnp.zeros((ext, out_c), jnp.float32)
        for t in range(9):                                   # static unroll
            dy, dx = divmod(t, 3)
            tap = src_ref[pl.ds(dy * wpad + dx, ext), :]     # (ext, C_in)
            acc = acc + jnp.dot(tap, w_ref[t],
                                preferred_element_type=jnp.float32)
        return jnp.maximum(acc + b_ref[...], 0.0)            # BN shift + ReLU

    # conv1 -> BN -> ReLU; write (masked) straight into conv2's padded scratch:
    # a shift of wpad+1 maps extended row (y, x) onto padded position (y+1, x+1),
    # and masked garbage lands exactly on halo columns (which must be zero).
    y1 = conv3x3_bn_relu(pad1_ref, w1_ref, b1_ref, cmid)     # (ext, Cmid)
    pad2_ref[pl.ds(wpad + 1, ext), :] = jnp.where(valid, y1, 0.0)

    # conv2 -> BN -> ReLU; drop the 2 garbage edge columns on the final store.
    y2 = conv3x3_bn_relu(pad2_ref, w2_ref, b2_ref, cout)     # (ext, Cout)
    for y in range(hp):                                      # static unroll
        o_ref[0, y, :, :] = y2[y * wpad:y * wpad + wp, :]


# ------------------------------ parameters ------------------------------

def init_down_params(key, in_channels, out_channels, mid_channels=None):
    if mid_channels is None:
        mid_channels = out_channels
    ks = jax.random.split(key, 12)

    def conv_bn(k0, k1, k2, k3, k4, k5, cin, cout):
        w = 0.1 * jax.random.normal(k0, (3, 3, cin, cout), jnp.float32)   # HWIO
        b = 0.1 * jax.random.normal(k1, (cout,), jnp.float32)
        gamma = 1.0 + 0.1 * jax.random.normal(k2, (cout,), jnp.float32)
        beta = 0.1 * jax.random.normal(k3, (cout,), jnp.float32)
        mean = 0.1 * jax.random.normal(k4, (cout,), jnp.float32)
        var = jax.random.uniform(k5, (cout,), jnp.float32, 0.5, 1.5)
        return (w, b, gamma, beta, mean, var)

    p1 = conv_bn(*ks[0:6], in_channels, mid_channels)
    p2 = conv_bn(*ks[6:12], mid_channels, out_channels)
    return (p1, p2)


def fold_bn(w, b, gamma, beta, mean, var, eps=1e-5):
    # BN(conv(x) + b) = scale * conv(x) + shift   (inference-mode BatchNorm)
    scale = gamma / jnp.sqrt(var + eps)
    shift = beta + scale * (b - mean)
    return w, scale, shift


# ------------------------------ Down.forward ------------------------------

def down_forward(x_nchw, params):
    p1, p2 = params
    w1, s1, t1 = fold_bn(*p1)
    w2, s2, t2 = fold_bn(*p2)

    n, cin, h, w = x_nchw.shape
    hp, wp = h // 2, w // 2
    cmid, cout = w1.shape[-1], w2.shape[-1]

    # NCHW -> NHWC once at the module boundary, crop to even spatial size (MaxPool2d
    # floor behaviour) and expose the 2x2 pool window via a free contiguous reshape.
    x = jnp.transpose(x_nchw, (0, 2, 3, 1)).astype(jnp.float32)
    x = x[:, :2 * hp, :2 * wp, :]
    x = x.reshape(n * hp, 2, wp, 2 * cin)

    # Fold BN scale into the conv weights on host (once).
    w1f = (w1 * s1).reshape(9, cin, cmid).astype(jnp.float32)
    w2f = (w2 * s2).reshape(9, cmid, cout).astype(jnp.float32)
    b1f = t1.reshape(1, cmid).astype(jnp.float32)
    b2f = t2.reshape(1, cout).astype(jnp.float32)

    wpad = wp + 2
    pad_rows = (hp + 2) * wpad + 2      # +2 keeps the farthest tap slab in bounds

    out = pl.pallas_call(
        _down_fused_kernel,
        out_shape=jax.ShapeDtypeStruct((n, hp, wp, cout), jnp.float32),
        grid=(n,),
        in_specs=[
            pl.BlockSpec((hp, 2, wp, 2 * cin), lambda i: (i, 0, 0, 0)),
            pl.BlockSpec((9, cin, cmid), lambda i: (0, 0, 0)),
            pl.BlockSpec((1, cmid), lambda i: (0, 0)),
            pl.BlockSpec((9, cmid, cout), lambda i: (0, 0, 0)),
            pl.BlockSpec((1, cout), lambda i: (0, 0)),
        ],
        out_specs=pl.BlockSpec((1, hp, wp, cout), lambda i: (i, 0, 0, 0)),
        scratch_shapes=[
            pltpu.VMEM((pad_rows, cin), jnp.float32),
            pltpu.VMEM((pad_rows, cmid), jnp.float32),
        ],
        compiler_params=pltpu.CompilerParams(
            dimension_semantics=("parallel",),
            vmem_limit_bytes=32 * 1024 * 1024,
        ),
    )(x, w1f, b1f, w2f, b2f)

    return jnp.transpose(out, (0, 3, 1, 2))                  # NHWC -> NCHW


def down_reference(x_nchw, params):
    """Pure-JAX (f32, HIGHEST precision) reference for the correctness check."""
    x = jnp.transpose(x_nchw, (0, 2, 3, 1)).astype(jnp.float32)
    x = jnp.max(jnp.stack([x[:, 0::2, 0::2, :], x[:, 0::2, 1::2, :],
                           x[:, 1::2, 0::2, :], x[:, 1::2, 1::2, :]]), axis=0)
    for p in params:
        w, scale, shift = fold_bn(*p)
        y = jax.lax.conv_general_dilated(
            x, w, window_strides=(1, 1), padding="SAME",
            dimension_numbers=("NHWC", "HWIO", "NHWC"),
            precision=jax.lax.Precision.HIGHEST)
        x = jnp.maximum(y * scale + shift, 0.0)
    return jnp.transpose(x, (0, 3, 1, 2))


if __name__ == "__main__":
    key = jax.random.PRNGKey(0)
    kx, kp = jax.random.split(key)

    N, Cin, H, W = 2, 4, 16, 16      # small shapes consistent with Down(in=4, out=8)
    Cout = 8
    x = jax.random.normal(kx, (N, Cin, H, W), jnp.float32)
    params = init_down_params(kp, Cin, Cout)

    down = jax.jit(down_forward)
    out = jax.block_until_ready(down(x, params))
    ref = jax.block_until_ready(down_reference(x, params))

    assert out.shape == (N, Cout, H // 2, W // 2), out.shape
    # Kernel is all-f32 now; this tolerance (inherited from the bf16 version) is
    # conservative.
    err = float(jnp.max(jnp.abs(out - ref)))
    assert jnp.allclose(out, ref, atol=3e-2, rtol=2e-2), err
    print("KERNEL_OK")
</pallas_src>

<mosaic_0001>
module attributes {stable_mosaic.version = 11 : i64} {
  func.func @_down_fused_kernel(%arg0: i32, %arg1: memref<8x2x8x8xf32, #tpu.memory_space<vmem>>, %arg2: memref<9x4x8xf32, #tpu.memory_space<vmem>>, %arg3: memref<1x8xf32, #tpu.memory_space<vmem>>, %arg4: memref<9x8x8xf32, #tpu.memory_space<vmem>>, %arg5: memref<1x8xf32, #tpu.memory_space<vmem>>, %arg6: memref<1x8x8x8xf32, #tpu.memory_space<vmem>>, %arg7: memref<102x4xf32, #tpu.memory_space<vmem>>, %arg8: memref<102x8xf32, #tpu.memory_space<vmem>>) attributes {dimension_semantics = [#tpu.dimension_semantics<parallel>], iteration_bounds = array<i64: 2>, scalar_prefetch = 0 : i64, scratch_operands = 2 : i64, tpu.core_type = #tpu.core_type<tc>, window_params = [{transform_indices = @transform_0, window_bounds = array<i64: 8, 2, 8, 8>}, {pipeline_mode = #tpu.pipeline_mode<synchronous>, transform_indices = @transform_1, window_bounds = array<i64: 9, 4, 8>}, {pipeline_mode = #tpu.pipeline_mode<synchronous>, transform_indices = @transform_2, window_bounds = array<i64: 1, 8>}, {pipeline_mode = #tpu.pipeline_mode<synchronous>, transform_indices = @transform_3, window_bounds = array<i64: 9, 8, 8>}, {pipeline_mode = #tpu.pipeline_mode<synchronous>, transform_indices = @transform_4, window_bounds = array<i64: 1, 8>}, {transform_indices = @transform_5, window_bounds = array<i64: 1, 8, 8, 8>}]} {
    %cst = arith.constant 0.000000e+00 : f32
    %0 = vector.broadcast %cst : f32 to vector<102x4xf32>
    %c0 = arith.constant 0 : index
    %c0_0 = arith.constant 0 : index
    %1 = vector.load %arg7[%c0, %c0_0] : memref<102x4xf32, #tpu.memory_space<vmem>>, vector<102x4xf32>
    tpu.vector_store %arg7[%c0, %c0_0], %0 {strides = array<i32>} : memref<102x4xf32, #tpu.memory_space<vmem>>, vector<102x4xf32>,
    %cst_1 = arith.constant 0.000000e+00 : f32
    %2 = vector.broadcast %cst_1 : f32 to vector<102x8xf32>
    %c0_2 = arith.constant 0 : index
    %c0_3 = arith.constant 0 : index
    %3 = vector.load %arg8[%c0_2, %c0_3] : memref<102x8xf32, #tpu.memory_space<vmem>>, vector<102x8xf32>
    tpu.vector_store %arg8[%c0_2, %c0_3], %2 {strides = array<i32>} : memref<102x8xf32, #tpu.memory_space<vmem>>, vector<102x8xf32>,
    %c0_4 = arith.constant 0 : index
    %c0_5 = arith.constant 0 : index
    %c0_6 = arith.constant 0 : index
    %c0_7 = arith.constant 0 : index
    %4 = vector.load %arg1[%c0_4, %c0_5, %c0_6, %c0_7] : memref<8x2x8x8xf32, #tpu.memory_space<vmem>>, vector<8x2x8x8xf32>
    %5 = vector.extract_strided_slice %4 {offsets = [0, 0, 0, 0], sizes = [8, 1, 8, 8], strides = [1, 1, 1, 1]} : vector<8x2x8x8xf32> to vector<8x1x8x8xf32>
    %6 = vector.shape_cast %5 : vector<8x1x8x8xf32> to vector<8x8x8xf32>
    %7 = vector.extract_strided_slice %4 {offsets = [0, 1, 0, 0], sizes = [8, 1, 8, 8], strides = [1, 1, 1, 1]} : vector<8x2x8x8xf32> to vector<8x1x8x8xf32>
    %8 = vector.shape_cast %7 : vector<8x1x8x8xf32> to vector<8x8x8xf32>
    %9 = arith.maximumf %6, %8 : vector<8x8x8xf32>
    %10 = vector.extract_strided_slice %9 {offsets = [0, 0, 0], sizes = [8, 8, 4], strides = [1, 1, 1]} : vector<8x8x8xf32> to vector<8x8x4xf32>
    %11 = vector.extract_strided_slice %9 {offsets = [0, 0, 4], sizes = [8, 8, 4], strides = [1, 1, 1]} : vector<8x8x8xf32> to vector<8x8x4xf32>
    %12 = arith.maximumf %10, %11 : vector<8x8x4xf32>
    %13 = vector.extract_strided_slice %12 {offsets = [0, 0, 0], sizes = [1, 8, 4], strides = [1, 1, 1]} : vector<8x8x4xf32> to vector<1x8x4xf32>
    %14 = vector.shape_cast %13 : vector<1x8x4xf32> to vector<8x4xf32>
    %c11 = arith.constant 11 : index
    %c0_8 = arith.constant 0 : index
    %15 = vector.load %arg7[%c11, %c0_8] : memref<102x4xf32, #tpu.memory_space<vmem>>, vector<8x4xf32>
    tpu.vector_store %arg7[%c11, %c0_8], %14 {strides = array<i32>} : memref<102x4xf32, #tpu.memory_space<vmem>>, vector<8x4xf32>,
    %16 = vector.extract_strided_slice %12 {offsets = [1, 0, 0], sizes = [1, 8, 4], strides = [1, 1, 1]} : vector<8x8x4xf32> to vector<1x8x4xf32>
    %17 = vector.shape_cast %16 : vector<1x8x4xf32> to vector<8x4xf32>
    %c21 = arith.constant 21 : index
    %c0_9 = arith.constant 0 : index
    %18 = vector.load %arg7[%c21, %c0_9] : memref<102x4xf32, #tpu.memory_space<vmem>>, vector<8x4xf32>
    tpu.vector_store %arg7[%c21, %c0_9], %17 {strides = array<i32>} : memref<102x4xf32, #tpu.memory_space<vmem>>, vector<8x4xf32>,
    %19 = vector.extract_strided_slice %12 {offsets = [2, 0, 0], sizes = [1, 8, 4], strides = [1, 1, 1]} : vector<8x8x4xf32> to vector<1x8x4xf32>
    %20 = vector.shape_cast %19 : vector<1x8x4xf32> to vector<8x4xf32>
    %c31 = arith.constant 31 : index
    %c0_10 = arith.constant 0 : index
    %21 = vector.load %arg7[%c31, %c0_10] : memref<102x4xf32, #tpu.memory_space<vmem>>, vector<8x4xf32>
    tpu.vector_store %arg7[%c31, %c0_10], %20 {strides = array<i32>} : memref<102x4xf32, #tpu.memory_space<vmem>>, vector<8x4xf32>,
    %22 = vector.extract_strided_slice %12 {offsets = [3, 0, 0], sizes = [1, 8, 4], strides = [1, 1, 1]} : vector<8x8x4xf32> to vector<1x8x4xf32>
    %23 = vector.shape_cast %22 : vector<1x8x4xf32> to vector<8x4xf32>
    %c41 = arith.constant 41 : index
    %c0_11 = arith.constant 0 : index
    %24 = vector.load %arg7[%c41, %c0_11] : memref<102x4xf32, #tpu.memory_space<vmem>>, vector<8x4xf32>
    tpu.vector_store %arg7[%c41, %c0_11], %23 {strides = array<i32>} : memref<102x4xf32, #tpu.memory_space<vmem>>, vector<8x4xf32>,
    %25 = vector.extract_strided_slice %12 {offsets = [4, 0, 0], sizes = [1, 8, 4], strides = [1, 1, 1]} : vector<8x8x4xf32> to vector<1x8x4xf32>
    %26 = vector.shape_cast %25 : vector<1x8x4xf32> to vector<8x4xf32>
    %c51 = arith.constant 51 : index
    %c0_12 = arith.constant 0 : index
    %27 = vector.load %arg7[%c51, %c0_12] : memref<102x4xf32, #tpu.memory_space<vmem>>, vector<8x4xf32>
    tpu.vector_store %arg7[%c51, %c0_12], %26 {strides = array<i32>} : memref<102x4xf32, #tpu.memory_space<vmem>>, vector<8x4xf32>,
    %28 = vector.extract_strided_slice %12 {offsets = [5, 0, 0], sizes = [1, 8, 4], strides = [1, 1, 1]} : vector<8x8x4xf32> to vector<1x8x4xf32>
    %29 = vector.shape_cast %28 : vector<1x8x4xf32> to vector<8x4xf32>
    %c61 = arith.constant 61 : index
    %c0_13 = arith.constant 0 : index
    %30 = vector.load %arg7[%c61, %c0_13] : memref<102x4xf32, #tpu.memory_space<vmem>>, vector<8x4xf32>
    tpu.vector_store %arg7[%c61, %c0_13], %29 {strides = array<i32>} : memref<102x4xf32, #tpu.memory_space<vmem>>, vector<8x4xf32>,
    %31 = vector.extract_strided_slice %12 {offsets = [6, 0, 0], sizes = [1, 8, 4], strides = [1, 1, 1]} : vector<8x8x4xf32> to vector<1x8x4xf32>
    %32 = vector.shape_cast %31 : vector<1x8x4xf32> to vector<8x4xf32>
    %c71 = arith.constant 71 : index
    %c0_14 = arith.constant 0 : index
    %33 = vector.load %arg7[%c71, %c0_14] : memref<102x4xf32, #tpu.memory_space<vmem>>, vector<8x4xf32>
    tpu.vector_store %arg7[%c71, %c0_14], %32 {strides = array<i32>} : memref<102x4xf32, #tpu.memory_space<vmem>>, vector<8x4xf32>,
    %34 = vector.extract_strided_slice %12 {offsets = [7, 0, 0], sizes = [1, 8, 4], strides = [1, 1, 1]} : vector<8x8x4xf32> to vector<1x8x4xf32>
    %35 = vector.shape_cast %34 : vector<1x8x4xf32> to vector<8x4xf32>
    %c81 = arith.constant 81 : index
    %c0_15 = arith.constant 0 : index
    %36 = vector.load %arg7[%c81, %c0_15] : memref<102x4xf32, #tpu.memory_space<vmem>>, vector<8x4xf32>
    tpu.vector_store %arg7[%c81, %c0_15], %35 {strides = array<i32>} : memref<102x4xf32, #tpu.memory_space<vmem>>, vector<8x4xf32>,
    %37 = tpu.iota {dimensions = array<i32: 0>} : vector<80x1xi32>
    %c10_i32 = arith.constant 10 : i32
    %c0_i32 = arith.constant 0 : i32
    %38 = arith.cmpi eq, %c10_i32, %c0_i32 : i32
    %c1_i32 = arith.constant 1 : i32
    %39 = arith.select %38, %c1_i32, %c10_i32 : i32
    %40 = vector.broadcast %39 : i32 to vector<80x1xi32>
    %41 = arith.remsi %37, %40 : vector<80x1xi32>
    %c0_i32_16 = arith.constant 0 : i32
    %42 = vector.broadcast %c0_i32_16 : i32 to vector<80x1xi32>
    %43 = arith.cmpi ne, %41, %42 : vector<80x1xi32>
    %c0_i32_17 = arith.constant 0 : i32
    %44 = vector.broadcast %c0_i32_17 : i32 to vector<80x1xi32>
    %45 = arith.cmpi slt, %41, %44 : vector<80x1xi32>
    %c0_i32_18 = arith.constant 0 : i32
    %46 = arith.cmpi slt, %39, %c0_i32_18 : i32
    %47 = vector.broadcast %46 : i1 to vector<80x1xi1>
    %48 = vector.broadcast %47 : vector<80x1xi1> to vector<80x1xi1>
    %49 = arith.xori %45, %48 : vector<80x1xi1>
    %50 = arith.andi %49, %43 : vector<80x1xi1>
    %51 = vector.broadcast %39 : i32 to vector<80x1xi32>
    %52 = arith.addi %41, %51 : vector<80x1xi32>
    %53 = arith.select %50, %52, %41 : vector<80x1xi1>, vector<80x1xi32>
    %c8_i32 = arith.constant 8 : i32
    %54 = vector.broadcast %c8_i32 : i32 to vector<80x1xi32>
    %55 = arith.cmpi slt, %53, %54 : vector<80x1xi32>
    %cst_19 = arith.constant 0.000000e+00 : f32
    %56 = vector.broadcast %cst_19 : f32 to vector<80x8xf32>
    %c0_20 = arith.constant 0 : index
    %c0_21 = arith.constant 0 : index
    %57 = vector.load %arg7[%c0_20, %c0_21] : memref<102x4xf32, #tpu.memory_space<vmem>>, vector<80x4xf32>
    %c0_22 = arith.constant 0 : index
    %c0_23 = arith.constant 0 : index
    %c0_24 = arith.constant 0 : index
    %58 = vector.load %arg2[%c0_22, %c0_23, %c0_24] : memref<9x4x8xf32, #tpu.memory_space<vmem>>, vector<1x4x8xf32>
    %59 = vector.shape_cast %58 : vector<1x4x8xf32> to vector<4x8xf32>
    %cst_25 = arith.constant dense<0.000000e+00> : vector<80x8xf32>
    %60 = tpu.matmul %57, %59, %cst_25 {dimension_numbers = #tpu.dot_dimension_numbers<[1], [0], [0], [1], [0, 0, 1, 1], [], []>} : vector<80x4xf32>, vector<4x8xf32>, vector<80x8xf32> -> vector<80x8xf32>
    %61 = arith.addf %56, %60 : vector<80x8xf32>
    %c1 = arith.constant 1 : index
    %c0_26 = arith.constant 0 : index
    %62 = vector.load %arg7[%c1, %c0_26] : memref<102x4xf32, #tpu.memory_space<vmem>>, vector<80x4xf32>
    %c1_27 = arith.constant 1 : index
    %c0_28 = arith.constant 0 : index
    %c0_29 = arith.constant 0 : index
    %63 = vector.load %arg2[%c1_27, %c0_28, %c0_29] : memref<9x4x8xf32, #tpu.memory_space<vmem>>, vector<1x4x8xf32>
    %64 = vector.shape_cast %63 : vector<1x4x8xf32> to vector<4x8xf32>
    %cst_30 = arith.constant dense<0.000000e+00> : vector<80x8xf32>
    %65 = tpu.matmul %62, %64, %cst_30 {dimension_numbers = #tpu.dot_dimension_numbers<[1], [0], [0], [1], [0, 0, 1, 1], [], []>} : vector<80x4xf32>, vector<4x8xf32>, vector<80x8xf32> -> vector<80x8xf32>
    %66 = arith.addf %61, %65 : vector<80x8xf32>
    %c2 = arith.constant 2 : index
    %c0_31 = arith.constant 0 : index
    %67 = vector.load %arg7[%c2, %c0_31] : memref<102x4xf32, #tpu.memory_space<vmem>>, vector<80x4xf32>
    %c2_32 = arith.constant 2 : index
    %c0_33 = arith.constant 0 : index
    %c0_34 = arith.constant 0 : index
    %68 = vector.load %arg2[%c2_32, %c0_33, %c0_34] : memref<9x4x8xf32, #tpu.memory_space<vmem>>, vector<1x4x8xf32>
    %69 = vector.shape_cast %68 : vector<1x4x8xf32> to vector<4x8xf32>
    %cst_35 = arith.constant dense<0.000000e+00> : vector<80x8xf32>
    %70 = tpu.matmul %67, %69, %cst_35 {dimension_numbers = #tpu.dot_dimension_numbers<[1], [0], [0], [1], [0, 0, 1, 1], [], []>} : vector<80x4xf32>, vector<4x8xf32>, vector<80x8xf32> -> vector<80x8xf32>
    %71 = arith.addf %66, %70 : vector<80x8xf32>
    %c10 = arith.constant 10 : index
    %c0_36 = arith.constant 0 : index
    %72 = vector.load %arg7[%c10, %c0_36] : memref<102x4xf32, #tpu.memory_space<vmem>>, vector<80x4xf32>
    %c3 = arith.constant 3 : index
    %c0_37 = arith.constant 0 : index
    %c0_38 = arith.constant 0 : index
    %73 = vector.load %arg2[%c3, %c0_37, %c0_38] : memref<9x4x8xf32, #tpu.memory_space<vmem>>, vector<1x4x8xf32>
    %74 = vector.shape_cast %73 : vector<1x4x8xf32> to vector<4x8xf32>
    %cst_39 = arith.constant dense<0.000000e+00> : vector<80x8xf32>
    %75 = tpu.matmul %72, %74, %cst_39 {dimension_numbers = #tpu.dot_dimension_numbers<[1], [0], [0], [1], [0, 0, 1, 1], [], []>} : vector<80x4xf32>, vector<4x8xf32>, vector<80x8xf32> -> vector<80x8xf32>
    %76 = arith.addf %71, %75 : vector<80x8xf32>
    %c11_40 = arith.constant 11 : index
    %c0_41 = arith.constant 0 : index
    %77 = vector.load %arg7[%c11_40, %c0_41] : memref<102x4xf32, #tpu.memory_space<vmem>>, vector<80x4xf32>
    %c4 = arith.constant 4 : index
    %c0_42 = arith.constant 0 : index
    %c0_43 = arith.constant 0 : index
    %78 = vector.load %arg2[%c4, %c0_42, %c0_43] : memref<9x4x8xf32, #tpu.memory_space<vmem>>, vector<1x4x8xf32>
    %79 = vector.shape_cast %78 : vector<1x4x8xf32> to vector<4x8xf32>
    %cst_44 = arith.constant dense<0.000000e+00> : vector<80x8xf32>
    %80 = tpu.matmul %77, %79, %cst_44 {dimension_numbers = #tpu.dot_dimension_numbers<[1], [0], [0], [1], [0, 0, 1, 1], [], []>} : vector<80x4xf32>, vector<4x8xf32>, vector<80x8xf32> -> vector<80x8xf32>
    %81 = arith.addf %76, %80 : vector<80x8xf32>
    %c12 = arith.constant 12 : index
    %c0_45 = arith.constant 0 : index
    %82 = vector.load %arg7[%c12, %c0_45] : memref<102x4xf32, #tpu.memory_space<vmem>>, vector<80x4xf32>
    %c5 = arith.constant 5 : index
    %c0_46 = arith.constant 0 : index
    %c0_47 = arith.constant 0 : index
    %83 = vector.load %arg2[%c5, %c0_46, %c0_47] : memref<9x4x8xf32, #tpu.memory_space<vmem>>, vector<1x4x8xf32>
    %84 = vector.shape_cast %83 : vector<1x4x8xf32> to vector<4x8xf32>
    %cst_48 = arith.constant dense<0.000000e+00> : vector<80x8xf32>
    %85 = tpu.matmul %82, %84, %cst_48 {dimension_numbers = #tpu.dot_dimension_numbers<[1], [0], [0], [1], [0, 0, 1, 1], [], []>} : vector<80x4xf32>, vector<4x8xf32>, vector<80x8xf32> -> vector<80x8xf32>
    %86 = arith.addf %81, %85 : vector<80x8xf32>
    %c20 = arith.constant 20 : index
    %c0_49 = arith.constant 0 : index
    %87 = vector.load %arg7[%c20, %c0_49] : memref<102x4xf32, #tpu.memory_space<vmem>>, vector<80x4xf32>
    %c6 = arith.constant 6 : index
    %c0_50 = arith.constant 0 : index
    %c0_51 = arith.constant 0 : index
    %88 = vector.load %arg2[%c6, %c0_50, %c0_51] : memref<9x4x8xf32, #tpu.memory_space<vmem>>, vector<1x4x8xf32>
    %89 = vector.shape_cast %88 : vector<1x4x8xf32> to vector<4x8xf32>
    %cst_52 = arith.constant dense<0.000000e+00> : vector<80x8xf32>
    %90 = tpu.matmul %87, %89, %cst_52 {dimension_numbers = #tpu.dot_dimension_numbers<[1], [0], [0], [1], [0, 0, 1, 1], [], []>} : vector<80x4xf32>, vector<4x8xf32>, vector<80x8xf32> -> vector<80x8xf32>
    %91 = arith.addf %86, %90 : vector<80x8xf32>
    %c21_53 = arith.constant 21 : index
    %c0_54 = arith.constant 0 : index
    %92 = vector.load %arg7[%c21_53, %c0_54] : memref<102x4xf32, #tpu.memory_space<vmem>>, vector<80x4xf32>
    %c7 = arith.constant 7 : index
    %c0_55 = arith.constant 0 : index
    %c0_56 = arith.constant 0 : index
    %93 = vector.load %arg2[%c7, %c0_55, %c0_56] : memref<9x4x8xf32, #tpu.memory_space<vmem>>, vector<1x4x8xf32>
    %94 = vector.shape_cast %93 : vector<1x4x8xf32> to vector<4x8xf32>
    %cst_57 = arith.constant dense<0.000000e+00> : vector<80x8xf32>
    %95 = tpu.matmul %92, %94, %cst_57 {dimension_numbers = #tpu.dot_dimension_numbers<[1], [0], [0], [1], [0, 0, 1, 1], [], []>} : vector<80x4xf32>, vector<4x8xf32>, vector<80x8xf32> -> vector<80x8xf32>
    %96 = arith.addf %91, %95 : vector<80x8xf32>
    %c22 = arith.constant 22 : index
    %c0_58 = arith.constant 0 : index
    %97 = vector.load %arg7[%c22, %c0_58] : memref<102x4xf32, #tpu.memory_space<vmem>>, vector<80x4xf32>
    %c8 = arith.constant 8 : index
    %c0_59 = arith.constant 0 : index
    %c0_60 = arith.constant 0 : index
    %98 = vector.load %arg2[%c8, %c0_59, %c0_60] : memref<9x4x8xf32, #tpu.memory_space<vmem>>, vector<1x4x8xf32>
    %99 = vector.shape_cast %98 : vector<1x4x8xf32> to vector<4x8xf32>
    %cst_61 = arith.constant dense<0.000000e+00> : vector<80x8xf32>
    %100 = tpu.matmul %97, %99, %cst_61 {dimension_numbers = #tpu.dot_dimension_numbers<[1], [0], [0], [1], [0, 0, 1, 1], [], []>} : vector<80x4xf32>, vector<4x8xf32>, vector<80x8xf32> -> vector<80x8xf32>
    %101 = arith.addf %96, %100 : vector<80x8xf32>
    %c0_62 = arith.constant 0 : index
    %c0_63 = arith.constant 0 : index
    %102 = vector.load %arg3[%c0_62, %c0_63] : memref<1x8xf32, #tpu.memory_space<vmem>>, vector<1x8xf32>
    %103 = vector.broadcast %102 : vector<1x8xf32> to vector<80x8xf32>
    %104 = arith.addf %101, %103 : vector<80x8xf32>
    %cst_64 = arith.constant 0.000000e+00 : f32
    %105 = vector.broadcast %cst_64 : f32 to vector<80x8xf32>
    %106 = arith.maximumf %104, %105 : vector<80x8xf32>
    %cst_65 = arith.constant 0.000000e+00 : f32
    %107 = vector.shape_cast %55 : vector<80x1xi1> to vector<80x1xi1>
    %108 = vector.broadcast %107 : vector<80x1xi1> to vector<80x8xi1>
    %109 = vector.broadcast %cst_65 : f32 to vector<80x8xf32>
    %110 = arith.select %108, %106, %109 : vector<80x8xi1>, vector<80x8xf32>
    %c11_66 = arith.constant 11 : index
    %c0_67 = arith.constant 0 : index
    %111 = vector.load %arg8[%c11_66, %c0_67] : memref<102x8xf32, #tpu.memory_space<vmem>>, vector<80x8xf32>
    tpu.vector_store %arg8[%c11_66, %c0_67], %110 {strides = array<i32>} : memref<102x8xf32, #tpu.memory_space<vmem>>, vector<80x8xf32>,
    %cst_68 = arith.constant 0.000000e+00 : f32
    %112 = vector.broadcast %cst_68 : f32 to vector<80x8xf32>
    %c0_69 = arith.constant 0 : index
    %c0_70 = arith.constant 0 : index
    %113 = vector.load %arg8[%c0_69, %c0_70] : memref<102x8xf32, #tpu.memory_space<vmem>>, vector<80x8xf32>
    %c0_71 = arith.constant 0 : index
    %c0_72 = arith.constant 0 : index
    %c0_73 = arith.constant 0 : index
    %114 = vector.load %arg4[%c0_71, %c0_72, %c0_73] : memref<9x8x8xf32, #tpu.memory_space<vmem>>, vector<1x8x8xf32>
    %115 = vector.shape_cast %114 : vector<1x8x8xf32> to vector<8x8xf32>
    %cst_74 = arith.constant dense<0.000000e+00> : vector<80x8xf32>
    %116 = tpu.matmul %113, %115, %cst_74 {dimension_numbers = #tpu.dot_dimension_numbers<[1], [0], [0], [1], [0, 0, 1, 1], [], []>} : vector<80x8xf32>, vector<8x8xf32>, vector<80x8xf32> -> vector<80x8xf32>
    %117 = arith.addf %112, %116 : vector<80x8xf32>
    %c1_75 = arith.constant 1 : index
    %c0_76 = arith.constant 0 : index
    %118 = vector.load %arg8[%c1_75, %c0_76] : memref<102x8xf32, #tpu.memory_space<vmem>>, vector<80x8xf32>
    %c1_77 = arith.constant 1 : index
    %c0_78 = arith.constant 0 : index
    %c0_79 = arith.constant 0 : index
    %119 = vector.load %arg4[%c1_77, %c0_78, %c0_79] : memref<9x8x8xf32, #tpu.memory_space<vmem>>, vector<1x8x8xf32>
    %120 = vector.shape_cast %119 : vector<1x8x8xf32> to vector<8x8xf32>
    %cst_80 = arith.constant dense<0.000000e+00> : vector<80x8xf32>
    %121 = tpu.matmul %118, %120, %cst_80 {dimension_numbers = #tpu.dot_dimension_numbers<[1], [0], [0], [1], [0, 0, 1, 1], [], []>} : vector<80x8xf32>, vector<8x8xf32>, vector<80x8xf32> -> vector<80x8xf32>
    %122 = arith.addf %117, %121 : vector<80x8xf32>
    %c2_81 = arith.constant 2 : index
    %c0_82 = arith.constant 0 : index
    %123 = vector.load %arg8[%c2_81, %c0_82] : memref<102x8xf32, #tpu.memory_space<vmem>>, vector<80x8xf32>
    %c2_83 = arith.constant 2 : index
    %c0_84 = arith.constant 0 : index
    %c0_85 = arith.constant 0 : index
    %124 = vector.load %arg4[%c2_83, %c0_84, %c0_85] : memref<9x8x8xf32, #tpu.memory_space<vmem>>, vector<1x8x8xf32>
    %125 = vector.shape_cast %124 : vector<1x8x8xf32> to vector<8x8xf32>
    %cst_86 = arith.constant dense<0.000000e+00> : vector<80x8xf32>
    %126 = tpu.matmul %123, %125, %cst_86 {dimension_numbers = #tpu.dot_dimension_numbers<[1], [0], [0], [1], [0, 0, 1, 1], [], []>} : vector<80x8xf32>, vector<8x8xf32>, vector<80x8xf32> -> vector<80x8xf32>
    %127 = arith.addf %122, %126 : vector<80x8xf32>
    %c10_87 = arith.constant 10 : index
    %c0_88 = arith.constant 0 : index
    %128 = vector.load %arg8[%c10_87, %c0_88] : memref<102x8xf32, #tpu.memory_space<vmem>>, vector<80x8xf32>
    %c3_89 = arith.constant 3 : index
    %c0_90 = arith.constant 0 : index
    %c0_91 = arith.constant 0 : index
    %129 = vector.load %arg4[%c3_89, %c0_90, %c0_91] : memref<9x8x8xf32, #tpu.memory_space<vmem>>, vector<1x8x8xf32>
    %130 = vector.shape_cast %129 : vector<1x8x8xf32> to vector<8x8xf32>
    %cst_92 = arith.constant dense<0.000000e+00> : vector<80x8xf32>
    %131 = tpu.matmul %128, %130, %cst_92 {dimension_numbers = #tpu.dot_dimension_numbers<[1], [0], [0], [1], [0, 0, 1, 1], [], []>} : vector<80x8xf32>, vector<8x8xf32>, vector<80x8xf32> -> vector<80x8xf32>
    %132 = arith.addf %127, %131 : vector<80x8xf32>
    %c11_93 = arith.constant 11 : index
    %c0_94 = arith.constant 0 : index
    %133 = vector.load %arg8[%c11_93, %c0_94] : memref<102x8xf32, #tpu.memory_space<vmem>>, vector<80x8xf32>
    %c4_95 = arith.constant 4 : index
    %c0_96 = arith.constant 0 : index
    %c0_97 = arith.constant 0 : index
    %134 = vector.load %arg4[%c4_95, %c0_96, %c0_97] : memref<9x8x8xf32, #tpu.memory_space<vmem>>, vector<1x8x8xf32>
    %135 = vector.shape_cast %134 : vector<1x8x8xf32> to vector<8x8xf32>
    %cst_98 = arith.constant dense<0.000000e+00> : vector<80x8xf32>
    %136 = tpu.matmul %133, %135, %cst_98 {dimension_numbers = #tpu.dot_dimension_numbers<[1], [0], [0], [1], [0, 0, 1, 1], [], []>} : vector<80x8xf32>, vector<8x8xf32>, vector<80x8xf32> -> vector<80x8xf32>
    %137 = arith.addf %132, %136 : vector<80x8xf32>
    %c12_99 = arith.constant 12 : index
    %c0_100 = arith.constant 0 : index
    %138 = vector.load %arg8[%c12_99, %c0_100] : memref<102x8xf32, #tpu.memory_space<vmem>>, vector<80x8xf32>
    %c5_101 = arith.constant 5 : index
    %c0_102 = arith.constant 0 : index
    %c0_103 = arith.constant 0 : index
    %139 = vector.load %arg4[%c5_101, %c0_102, %c0_103] : memref<9x8x8xf32, #tpu.memory_space<vmem>>, vector<1x8x8xf32>
    %140 = vector.shape_cast %139 : vector<1x8x8xf32> to vector<8x8xf32>
    %cst_104 = arith.constant dense<0.000000e+00> : vector<80x8xf32>
    %141 = tpu.matmul %138, %140, %cst_104 {dimension_numbers = #tpu.dot_dimension_numbers<[1], [0], [0], [1], [0, 0, 1, 1], [], []>} : vector<80x8xf32>, vector<8x8xf32>, vector<80x8xf32> -> vector<80x8xf32>
    %142 = arith.addf %137, %141 : vector<80x8xf32>
    %c20_105 = arith.constant 20 : index
    %c0_106 = arith.constant 0 : index
    %143 = vector.load %arg8[%c20_105, %c0_106] : memref<102x8xf32, #tpu.memory_space<vmem>>, vector<80x8xf32>
    %c6_107 = arith.constant 6 : index
    %c0_108 = arith.constant 0 : index
    %c0_109 = arith.constant 0 : index
    %144 = vector.load %arg4[%c6_107, %c0_108, %c0_109] : memref<9x8x8xf32, #tpu.memory_space<vmem>>, vector<1x8x8xf32>
    %145 = vector.shape_cast %144 : vector<1x8x8xf32> to vector<8x8xf32>
    %cst_110 = arith.constant dense<0.000000e+00> : vector<80x8xf32>
    %146 = tpu.matmul %143, %145, %cst_110 {dimension_numbers = #tpu.dot_dimension_numbers<[1], [0], [0], [1], [0, 0, 1, 1], [], []>} : vector<80x8xf32>, vector<8x8xf32>, vector<80x8xf32> -> vector<80x8xf32>
    %147 = arith.addf %142, %146 : vector<80x8xf32>
    %c21_111 = arith.constant 21 : index
    %c0_112 = arith.constant 0 : index
    %148 = vector.load %arg8[%c21_111, %c0_112] : memref<102x8xf32, #tpu.memory_space<vmem>>, vector<80x8xf32>
    %c7_113 = arith.constant 7 : index
    %c0_114 = arith.constant 0 : index
    %c0_115 = arith.constant 0 : index
    %149 = vector.load %arg4[%c7_113, %c0_114, %c0_115] : memref<9x8x8xf32, #tpu.memory_space<vmem>>, vector<1x8x8xf32>
    %150 = vector.shape_cast %149 : vector<1x8x8xf32> to vector<8x8xf32>
    %cst_116 = arith.constant dense<0.000000e+00> : vector<80x8xf32>
    %151 = tpu.matmul %148, %150, %cst_116 {dimension_numbers = #tpu.dot_dimension_numbers<[1], [0], [0], [1], [0, 0, 1, 1], [], []>} : vector<80x8xf32>, vector<8x8xf32>, vector<80x8xf32> -> vector<80x8xf32>
    %152 = arith.addf %147, %151 : vector<80x8xf32>
    %c22_117 = arith.constant 22 : index
    %c0_118 = arith.constant 0 : index
    %153 = vector.load %arg8[%c22_117, %c0_118] : memref<102x8xf32, #tpu.memory_space<vmem>>, vector<80x8xf32>
    %c8_119 = arith.constant 8 : index
    %c0_120 = arith.constant 0 : index
    %c0_121 = arith.constant 0 : index
    %154 = vector.load %arg4[%c8_119, %c0_120, %c0_121] : memref<9x8x8xf32, #tpu.memory_space<vmem>>, vector<1x8x8xf32>
    %155 = vector.shape_cast %154 : vector<1x8x8xf32> to vector<8x8xf32>
    %cst_122 = arith.constant dense<0.000000e+00> : vector<80x8xf32>
    %156 = tpu.matmul %153, %155, %cst_122 {dimension_numbers = #tpu.dot_dimension_numbers<[1], [0], [0], [1], [0, 0, 1, 1], [], []>} : vector<80x8xf32>, vector<8x8xf32>, vector<80x8xf32> -> vector<80x8xf32>
    %157 = arith.addf %152, %156 : vector<80x8xf32>
    %c0_123 = arith.constant 0 : index
    %c0_124 = arith.constant 0 : index
    %158 = vector.load %arg5[%c0_123, %c0_124] : memref<1x8xf32, #tpu.memory_space<vmem>>, vector<1x8xf32>
    %159 = vector.broadcast %158 : vector<1x8xf32> to vector<80x8xf32>
    %160 = arith.addf %157, %159 : vector<80x8xf32>
    %cst_125 = arith.constant 0.000000e+00 : f32
    %161 = vector.broadcast %cst_125 : f32 to vector<80x8xf32>
    %162 = arith.maximumf %160, %161 : vector<80x8xf32>
    %163 = vector.extract_strided_slice %162 {offsets = [0, 0], sizes = [8, 8], strides = [1, 1]} : vector<80x8xf32> to vector<8x8xf32>
    %c0_126 = arith.constant 0 : index
    %c0_127 = arith.constant 0 : index
    %c0_128 = arith.constant 0 : index
    %c0_129 = arith.constant 0 : index
    %164 = vector.load %arg6[%c0_126, %c0_127, %c0_128, %c0_129] : memref<1x8x8x8xf32, #tpu.memory_space<vmem>>, vector<1x1x8x8xf32>
    %165 = vector.shape_cast %164 : vector<1x1x8x8xf32> to vector<8x8xf32>
    %166 = vector.shape_cast %163 : vector<8x8xf32> to vector<1x1x8x8xf32>
    tpu.vector_store %arg6[%c0_126, %c0_127, %c0_128, %c0_129], %166 {strides = array<i32>} : memref<1x8x8x8xf32, #tpu.memory_space<vmem>>, vector<1x1x8x8xf32>,
    %167 = vector.extract_strided_slice %162 {offsets = [10, 0], sizes = [8, 8], strides = [1, 1]} : vector<80x8xf32> to vector<8x8xf32>
    %c0_130 = arith.constant 0 : index
    %c1_131 = arith.constant 1 : index
    %c0_132 = arith.constant 0 : index
    %c0_133 = arith.constant 0 : index
    %168 = vector.load %arg6[%c0_130, %c1_131, %c0_132, %c0_133] : memref<1x8x8x8xf32, #tpu.memory_space<vmem>>, vector<1x1x8x8xf32>
    %169 = vector.shape_cast %168 : vector<1x1x8x8xf32> to vector<8x8xf32>
    %170 = vector.shape_cast %167 : vector<8x8xf32> to vector<1x1x8x8xf32>
    tpu.vector_store %arg6[%c0_130, %c1_131, %c0_132, %c0_133], %170 {strides = array<i32>} : memref<1x8x8x8xf32, #tpu.memory_space<vmem>>, vector<1x1x8x8xf32>,
    %171 = vector.extract_strided_slice %162 {offsets = [20, 0], sizes = [8, 8], strides = [1, 1]} : vector<80x8xf32> to vector<8x8xf32>
    %c0_134 = arith.constant 0 : index
    %c2_135 = arith.constant 2 : index
    %c0_136 = arith.constant 0 : index
    %c0_137 = arith.constant 0 : index
    %172 = vector.load %arg6[%c0_134, %c2_135, %c0_136, %c0_137] : memref<1x8x8x8xf32, #tpu.memory_space<vmem>>, vector<1x1x8x8xf32>
    %173 = vector.shape_cast %172 : vector<1x1x8x8xf32> to vector<8x8xf32>
    %174 = vector.shape_cast %171 : vector<8x8xf32> to vector<1x1x8x8xf32>
    tpu.vector_store %arg6[%c0_134, %c2_135, %c0_136, %c0_137], %174 {strides = array<i32>} : memref<1x8x8x8xf32, #tpu.memory_space<vmem>>, vector<1x1x8x8xf32>,
    %175 = vector.extract_strided_slice %162 {offsets = [30, 0], sizes = [8, 8], strides = [1, 1]} : vector<80x8xf32> to vector<8x8xf32>
    %c0_138 = arith.constant 0 : index
    %c3_139 = arith.constant 3 : index
    %c0_140 = arith.constant 0 : index
    %c0_141 = arith.constant 0 : index
    %176 = vector.load %arg6[%c0_138, %c3_139, %c0_140, %c0_141] : memref<1x8x8x8xf32, #tpu.memory_space<vmem>>, vector<1x1x8x8xf32>
    %177 = vector.shape_cast %176 : vector<1x1x8x8xf32> to vector<8x8xf32>
    %178 = vector.shape_cast %175 : vector<8x8xf32> to vector<1x1x8x8xf32>
    tpu.vector_store %arg6[%c0_138, %c3_139, %c0_140, %c0_141], %178 {strides = array<i32>} : memref<1x8x8x8xf32, #tpu.memory_space<vmem>>, vector<1x1x8x8xf32>,
    %179 = vector.extract_strided_slice %162 {offsets = [40, 0], sizes = [8, 8], strides = [1, 1]} : vector<80x8xf32> to vector<8x8xf32>
    %c0_142 = arith.constant 0 : index
    %c4_143 = arith.constant 4 : index
    %c0_144 = arith.constant 0 : index
    %c0_145 = arith.constant 0 : index
    %180 = vector.load %arg6[%c0_142, %c4_143, %c0_144, %c0_145] : memref<1x8x8x8xf32, #tpu.memory_space<vmem>>, vector<1x1x8x8xf32>
    %181 = vector.shape_cast %180 : vector<1x1x8x8xf32> to vector<8x8xf32>
    %182 = vector.shape_cast %179 : vector<8x8xf32> to vector<1x1x8x8xf32>
    tpu.vector_store %arg6[%c0_142, %c4_143, %c0_144, %c0_145], %182 {strides = array<i32>} : memref<1x8x8x8xf32, #tpu.memory_space<vmem>>, vector<1x1x8x8xf32>,
    %183 = vector.extract_strided_slice %162 {offsets = [50, 0], sizes = [8, 8], strides = [1, 1]} : vector<80x8xf32> to vector<8x8xf32>
    %c0_146 = arith.constant 0 : index
    %c5_147 = arith.constant 5 : index
    %c0_148 = arith.constant 0 : index
    %c0_149 = arith.constant 0 : index
    %184 = vector.load %arg6[%c0_146, %c5_147, %c0_148, %c0_149] : memref<1x8x8x8xf32, #tpu.memory_space<vmem>>, vector<1x1x8x8xf32>
    %185 = vector.shape_cast %184 : vector<1x1x8x8xf32> to vector<8x8xf32>
    %186 = vector.shape_cast %183 : vector<8x8xf32> to vector<1x1x8x8xf32>
    tpu.vector_store %arg6[%c0_146, %c5_147, %c0_148, %c0_149], %186 {strides = array<i32>} : memref<1x8x8x8xf32, #tpu.memory_space<vmem>>, vector<1x1x8x8xf32>,
    %187 = vector.extract_strided_slice %162 {offsets = [60, 0], sizes = [8, 8], strides = [1, 1]} : vector<80x8xf32> to vector<8x8xf32>
    %c0_150 = arith.constant 0 : index
    %c6_151 = arith.constant 6 : index
    %c0_152 = arith.constant 0 : index
    %c0_153 = arith.constant 0 : index
    %188 = vector.load %arg6[%c0_150, %c6_151, %c0_152, %c0_153] : memref<1x8x8x8xf32, #tpu.memory_space<vmem>>, vector<1x1x8x8xf32>
    %189 = vector.shape_cast %188 : vector<1x1x8x8xf32> to vector<8x8xf32>
    %190 = vector.shape_cast %187 : vector<8x8xf32> to vector<1x1x8x8xf32>
    tpu.vector_store %arg6[%c0_150, %c6_151, %c0_152, %c0_153], %190 {strides = array<i32>} : memref<1x8x8x8xf32, #tpu.memory_space<vmem>>, vector<1x1x8x8xf32>,
    %191 = vector.extract_strided_slice %162 {offsets = [70, 0], sizes = [8, 8], strides = [1, 1]} : vector<80x8xf32> to vector<8x8xf32>
    %c0_154 = arith.constant 0 : index
    %c7_155 = arith.constant 7 : index
    %c0_156 = arith.constant 0 : index
    %c0_157 = arith.constant 0 : index
    %192 = vector.load %arg6[%c0_154, %c7_155, %c0_156, %c0_157] : memref<1x8x8x8xf32, #tpu.memory_space<vmem>>, vector<1x1x8x8xf32>
    %193 = vector.shape_cast %192 : vector<1x1x8x8xf32> to vector<8x8xf32>
    %194 = vector.shape_cast %191 : vector<8x8xf32> to vector<1x1x8x8xf32>
    tpu.vector_store %arg6[%c0_154, %c7_155, %c0_156, %c0_157], %194 {strides = array<i32>} : memref<1x8x8x8xf32, #tpu.memory_space<vmem>>, vector<1x1x8x8xf32>,
    return
  }
  func.func @transform_0(%arg0: i32) -> (i32, i32, i32, i32) {
    %c0_i32 = arith.constant 0 : i32
    %c0_i32_0 = arith.constant 0 : i32
    %c0_i32_1 = arith.constant 0 : i32
    %c0_i32_2 = arith.constant 0 : i32
    return %arg0, %c0_i32, %c0_i32_0, %c0_i32_1 : i32, i32, i32, i32
  }
  func.func @transform_1(%arg0: i32) -> (i32, i32, i32) {
    %c0_i32 = arith.constant 0 : i32
    %c0_i32_0 = arith.constant 0 : i32
    %c0_i32_1 = arith.constant 0 : i32
    %c0_i32_2 = arith.constant 0 : i32
    return %c0_i32, %c0_i32_0, %c0_i32_1 : i32, i32, i32
  }
  func.func @transform_2(%arg0: i32) -> (i32, i32) {
    %c0_i32 = arith.constant 0 : i32
    %c0_i32_0 = arith.constant 0 : i32
    %c0_i32_1 = arith.constant 0 : i32
    return %c0_i32, %c0_i32_0 : i32, i32
  }
  func.func @transform_3(%arg0: i32) -> (i32, i32, i32) {
    %c0_i32 = arith.constant 0 : i32
    %c0_i32_0 = arith.constant 0 : i32
    %c0_i32_1 = arith.constant 0 : i32
    %c0_i32_2 = arith.constant 0 : i32
    return %c0_i32, %c0_i32_0, %c0_i32_1 : i32, i32, i32
  }
  func.func @transform_4(%arg0: i32) -> (i32, i32) {
    %c0_i32 = arith.constant 0 : i32
    %c0_i32_0 = arith.constant 0 : i32
    %c0_i32_1 = arith.constant 0 : i32
    return %c0_i32, %c0_i32_0 : i32, i32
  }
  func.func @transform_5(%arg0: i32) -> (i32, i32, i32, i32) {
    %c0_i32 = arith.constant 0 : i32
    %c0_i32_0 = arith.constant 0 : i32
    %c0_i32_1 = arith.constant 0 : i32
    %c0_i32_2 = arith.constant 0 : i32
    return %arg0, %c0_i32, %c0_i32_0, %c0_i32_1 : i32, i32, i32, i32
  }
}

</mosaic_0001>

<llo_original>
// kernel: down_forward.1
$region0: #{down_forward.1}
  #allocation0 [shape = 'u32[]', space=smem, size = 0x4, offset = 0x4, fixed_abs, tag = 'smem constant byte address 0x4 - core index']
  #allocation1 [shape = 'u32[72,128]{1,0:T(1,128)}', space=vmem, size = 0x9000, scoped, tag = 'internal scratch']
  #allocation2 [shape = 'f32[102,4]{1,0:T(8,128)}', space=vmem, size = 0xd000, scoped, tag = 'scratch operand']
  #allocation3 [shape = 'f32[102,8]{1,0:T(8,128)}', space=vmem, size = 0xd000, scoped, tag = 'scratch operand']
  %s0 = inlined_call_operand.vmem [shape: f32[16,2,8,8], index: 0, kind: input, shape index: {}]
  %s1 = inlined_call_operand.vmem [shape: f32[9,4,8], index: 1, kind: input, shape index: {}]
  %s2 = inlined_call_operand.vmem [shape: f32[1,8], index: 2, kind: input, shape index: {}]
  %s3 = inlined_call_operand.vmem [shape: f32[9,8,8], index: 3, kind: input, shape index: {}]
  %s4 = inlined_call_operand.vmem [shape: f32[1,8], index: 4, kind: input, shape index: {}]
  %s5 = inlined_call_operand.vmem [shape: f32[2,8,8,8], index: 5, kind: output, shape index: {}]
  %s6 = sld [smem:[#allocation0]]
  $region53: #{down_forward.1} parent=0
    _
  %s8 = ssub.s32 1, %s6
  %s9 = scalar_select 0, %s8, %s6
  loop: start=0, step=1, limit=4
  $region2: #{down_forward.1} parent=0 // loop_pre_header
    _
  $region3: #{down_forward.1} parent=0 // loop_header
    %s11 = sphi 0, %s15
    %p12 = scmp.ge.s32.totalorder %s11, 4
    %s21 = sphi 0, %s23
    %s24 = sphi 0, %s21
    %s25 = sphi 0, %s24
    %s41 = sphi 0, %s25
    %s45 = sphi 0, %s45
    %s47 = sphi 0, %s45
    %s48 = sphi 0, %s47
    %s62 = sphi 0, %s48
    %s66 = sphi 0, %s66
    %s68 = sphi 0, %s66
    %s69 = sphi 0, %s68
    %s83 = sphi 0, %s69
    %s87 = sphi 0, %s87
    %s89 = sphi 0, %s87
    %s90 = sphi 0, %s89
    %s104 = sphi 0, %s90
    %s108 = sphi 0, %s108
    %s110 = sphi 0, %s108
    %s111 = sphi 0, %s110
    %s125 = sphi 0, %s111
    %s131 = sphi 0, %s133
    %s134 = sphi 0, %s131
    %s135 = sphi 0, %s134
    %s151 = sphi 0, %s135
  $region4: #{down_forward.1} parent=0 // loop_header_branch
    %14 = sbr.rel (%p12) target = $region8
  $region5: #{down_forward.1} parent=0 // loop_body
    %s16 = ssub.s32 %s11, 1
    %s17 = ssub.s32 %s11, 2
    %s18 = sadd.s32 %s11, 1
    %s19 = ssub.s32 %s11, %s18
    %p20 = scmp.eq.s32.totalorder %s19, 0
    %s22 = sadd.s32 %s21, 1
    %s23 = scalar_select %p20, %s21, %s22
    %p26 = pneg %p20
    %p27 = scmp.eq.s32.totalorder %s11, 1
    %p28 = por %p26, %p27
    %p29 = scmp.ne.s32.totalorder %s21, %s24
    %p30 = scmp.eq.s32.totalorder %s11, 0
    %p31 = por %p29, %p30
    %p32 = scmp.ne.s32.totalorder %s21, %s24
    %p33 = scmp.eq.s32.totalorder %s16, 1
    %p34 = por %p32, %p33
    %p35 = scmp.ne.s32.totalorder %s24, %s25
    %p36 = scmp.eq.s32.totalorder %s16, 0
    %p37 = por %p35, %p36
    %p38 = scmp.ne.s32.totalorder %s24, %s25
    %p39 = scmp.eq.s32.totalorder %s17, 1
    %p40 = por %p38, %p39
    %p42 = scmp.ne.s32.totalorder %s25, %s41
    %p43 = scmp.eq.s32.totalorder %s17, 0
    %p44 = por %p42, %p43
    %s46 = sadd.s32 %s45, 1
    %p49 = scmp.eq.s32.totalorder %s11, 1
    %p50 = scmp.ne.s32.totalorder %s45, %s47
    %p51 = scmp.eq.s32.totalorder %s11, 0
    %p52 = por %p50, %p51
    %p53 = scmp.ne.s32.totalorder %s45, %s47
    %p54 = scmp.eq.s32.totalorder %s16, 1
    %p55 = por %p53, %p54
    %p56 = scmp.ne.s32.totalorder %s47, %s48
    %p57 = scmp.eq.s32.totalorder %s16, 0
    %p58 = por %p56, %p57
    %p59 = scmp.ne.s32.totalorder %s47, %s48
    %p60 = scmp.eq.s32.totalorder %s17, 1
    %p61 = por %p59, %p60
    %p63 = scmp.ne.s32.totalorder %s48, %s62
    %p64 = scmp.eq.s32.totalorder %s17, 0
    %p65 = por %p63, %p64
    %s67 = sadd.s32 %s66, 1
    %p70 = scmp.eq.s32.totalorder %s11, 1
    %p71 = scmp.ne.s32.totalorder %s66, %s68
    %p72 = scmp.eq.s32.totalorder %s11, 0
    %p73 = por %p71, %p72
    %p74 = scmp.ne.s32.totalorder %s66, %s68
    %p75 = scmp.eq.s32.totalorder %s16, 1
    %p76 = por %p74, %p75
    %p77 = scmp.ne.s32.totalorder %s68, %s69
    %p78 = scmp.eq.s32.totalorder %s16, 0
    %p79 = por %p77, %p78
    %p80 = scmp.ne.s32.totalorder %s68, %s69
    %p81 = scmp.eq.s32.totalorder %s17, 1
    %p82 = por %p80, %p81
    %p84 = scmp.ne.s32.totalorder %s69, %s83
    %p85 = scmp.eq.s32.totalorder %s17, 0
    %p86 = por %p84, %p85
    %s88 = sadd.s32 %s87, 1
    %p91 = scmp.eq.s32.totalorder %s11, 1
    %p92 = scmp.ne.s32.totalorder %s87, %s89
    %p93 = scmp.eq.s32.totalorder %s11, 0
    %p94 = por %p92, %p93
    %p95 = scmp.ne.s32.totalorder %s87, %s89
    %p96 = scmp.eq.s32.totalorder %s16, 1
    %p97 = por %p95, %p96
    %p98 = scmp.ne.s32.totalorder %s89, %s90
    %p99 = scmp.eq.s32.totalorder %s16, 0
    %p100 = por %p98, %p99
    %p101 = scmp.ne.s32.totalorder %s89, %s90
    %p102 = scmp.eq.s32.totalorder %s17, 1
    %p103 = por %p101, %p102
    %p105 = scmp.ne.s32.totalorder %s90, %s104
    %p106 = scmp.eq.s32.totalorder %s17, 0
    %p107 = por %p105, %p106
    %s109 = sadd.s32 %s108, 1
    %p112 = scmp.eq.s32.totalorder %s11, 1
    %p113 = scmp.ne.s32.totalorder %s108, %s110
    %p114 = scmp.eq.s32.totalorder %s11, 0
    %p115 = por %p113, %p114
    %p116 = scmp.ne.s32.totalorder %s108, %s110
    %p117 = scmp.eq.s32.totalorder %s16, 1
    %p118 = por %p116, %p117
    %p119 = scmp.ne.s32.totalorder %s110, %s111
    %p120 = scmp.eq.s32.totalorder %s16, 0
    %p121 = por %p119, %p120
    %p122 = scmp.ne.s32.totalorder %s110, %s111
    %p123 = scmp.eq.s32.totalorder %s17, 1
    %p124 = por %p122, %p123
    %p126 = scmp.ne.s32.totalorder %s111, %s125
    %p127 = scmp.eq.s32.totalorder %s17, 0
    %p128 = por %p126, %p127
    %s129 = ssub.s32 %s11, %s18
    %p130 = scmp.eq.s32.totalorder %s129, 0
    %s132 = sadd.s32 %s131, 1
    %s133 = scalar_select %p130, %s131, %s132
    %p136 = pneg %p130
    %p137 = scmp.eq.s32.totalorder %s11, 1
    %p138 = por %p136, %p137
    %p139 = scmp.ne.s32.totalorder %s131, %s134
    %p140 = scmp.eq.s32.totalorder %s11, 0
    %p141 = por %p139, %p140
    %p142 = scmp.ne.s32.totalorder %s131, %s134
    %p143 = scmp.eq.s32.totalorder %s16, 1
    %p144 = por %p142, %p143
    %p145 = scmp.ne.s32.totalorder %s134, %s135
    %p146 = scmp.eq.s32.totalorder %s16, 0
    %p147 = por %p145, %p146
    %p148 = scmp.ne.s32.totalorder %s134, %s135
    %p149 = scmp.eq.s32.totalorder %s17, 1
    %p150 = por %p148, %p149
    %p152 = scmp.ne.s32.totalorder %s135, %s151
    %p153 = scmp.eq.s32.totalorder %s17, 0
    %p154 = por %p152, %p153
    %p155 = scmp.le.s32.totalorder 1, %s11
    %p156 = scmp.lt.s32.totalorder %s11, 3
    %p157 = pnand %p155, %p156
    %p158 = pneg %p157
    // Predicated region
    $region9: #{down_forward.1} parent=5 // pred_check
      _
    $region10: #{down_forward.1} parent=5 // pred_check_branch
      %160 = sbr.rel (%p157) target = $region12
    $region11: #{down_forward.1} parent=5 // pred_region
      %s161 = ssub.s32 %s11, 1
      // Predicated region
      $region13: #{down_forward.1} parent=11 // pred_check
        %p162 = pneg %p58
      $region14: #{down_forward.1} parent=11 // pred_check_branch
        %164 = sbr.rel (%p162) target = $region16
      $region15: #{down_forward.1} parent=11 // pred_region
        _
      $region16: #{down_forward.1} parent=11 // pred_fallthru
        _
      // Predicated region
      $region17: #{down_forward.1} parent=11 // pred_check
        %p165 = pneg %p79
      $region18: #{down_forward.1} parent=11 // pred_check_branch
        %167 = sbr.rel (%p165) target = $region20
      $region19: #{down_forward.1} parent=11 // pred_region
        _
      $region20: #{down_forward.1} parent=11 // pred_fallthru
        _
      // Predicated region
      $region21: #{down_forward.1} parent=11 // pred_check
        %p168 = pneg %p100
      $region22: #{down_forward.1} parent=11 // pred_check_branch
        %170 = sbr.rel (%p168) target = $region24
      $region23: #{down_forward.1} parent=11 // pred_region
        _
      $region24: #{down_forward.1} parent=11 // pred_fallthru
        _
      // Predicated region
      $region25: #{down_forward.1} parent=11 // pred_check
        %p171 = pneg %p121
      $region26: #{down_forward.1} parent=11 // pred_check_branch
        %173 = sbr.rel (%p171) target = $region28
      $region27: #{down_forward.1} parent=11 // pred_region
        _
      $region28: #{down_forward.1} parent=11 // pred_fallthru
        _
    $region12: #{down_forward.1} parent=5 // pred_fallthru
      _
    %p174 = scmp.lt.s32.totalorder %s11, 2
    // Predicated region
    $region29: #{down_forward.1} parent=5 // pred_check
      %p175 = pneg %p174
    $region30: #{down_forward.1} parent=5 // pred_check_branch
      %177 = sbr.rel (%p175) target = $region32
    $region31: #{down_forward.1} parent=5 // pred_region
      // Predicated region
      $region33: #{down_forward.1} parent=31 // pred_check
        %p178 = pneg %p31
      $region34: #{down_forward.1} parent=31 // pred_check_branch
        %180 = sbr.rel (%p178) target = $region36
      $region35: #{down_forward.1} parent=31 // pred_region
        %s181 = smul.u32 8, %s11
        %p182 = scmp.lt.s32.totalorder %s181, 15
        %s183 = scalar_select %p182, %s181, 15
        %s184 = smul.addr %s183, 2
        %s185 = smul.addr %s184, 8
        %s186 = scalar_lea.vmem %s0, %s185
        %s187 = smul.u32 8, %s11
      $region36: #{down_forward.1} parent=31 // pred_fallthru
        _
    $region32: #{down_forward.1} parent=5 // pred_fallthru
      _
    %p188 = scmp.le.s32.totalorder 1, %s11
    %p189 = scmp.lt.s32.totalorder %s11, 3
    %p190 = pnand %p188, %p189
    %p191 = pneg %p190
    // Predicated region
    $region37: #{down_forward.1} parent=5 // pred_check
      _
    $region38: #{down_forward.1} parent=5 // pred_check_branch
      %193 = sbr.rel (%p190) target = $region40
    $region39: #{down_forward.1} parent=5 // pred_region
      %s194 = ssub.s32 %s11, 1
      %s195 = smul.u32 8, %s16
      %p196 = scmp.lt.s32.totalorder %s195, 15
      %s197 = scalar_select %p196, %s195, 15
      %s198 = smul.addr %s197, 2
      %s199 = smul.addr %s198, 8
      %s200 = scalar_lea.vmem %s0, %s199
      %p201 = pneg %p37
      %p202 = pneg %p34
      %p203 = pneg %p58
      %p204 = pneg %p55
      %p205 = pneg %p79
      %p206 = pneg %p76
      %p207 = pneg %p100
      %p208 = pneg %p97
      %p209 = pneg %p121
      %p210 = pneg %p118
      %p211 = pneg %p147
      %p212 = pneg %p144
      %p213 = scmp.lt.s32.totalorder %s16, 1
      %s214 = scalar_select %p213, %s16, 1
      %s215 = smul.addr %s214, 8
      %s216 = smul.addr %s215, 8
      %s217 = scalar_lea.vmem %s5, %s216
      %s218 = smul.u32 8, %s16
      %p219 = scmp.lt.s32.totalorder %s218, 15
      %s220 = scalar_select %p219, %s218, 15
      %s221 = smul.addr %s220, 2
      %s222 = smul.addr %s221, 8
      %s223 = scalar_lea.vmem %s0, %s222
      %s224 = smul.u32 8, %s16
      %p225 = scmp.lt.s32.totalorder %s16, 1
      %s226 = scalar_select %p225, %s16, 1
      %s227 = smul.addr %s226, 8
      %s228 = smul.addr %s227, 8
      %s229 = scalar_lea.vmem %s5, %s228
      %vm230 = vcmask 31744
      %231 = vst.msk [vmem:[#allocation2] sm:$0xff] %vm230, 0.0
      %232 = vst.msk [vmem:[#allocation2 + $0x8] sm:$0xff] %vm230, 0.0
      %233 = vst.msk [vmem:[#allocation2 + $0x10] sm:$0xff] %vm230, 0.0
      %234 = vst.msk [vmem:[#allocation2 + $0x18] sm:$0xff] %vm230, 0.0
      %235 = vst.msk [vmem:[#allocation2 + $0x20] sm:$0xff] %vm230, 0.0
      %236 = vst.msk [vmem:[#allocation2 + $0x28] sm:$0xff] %vm230, 0.0
      %237 = vst.msk [vmem:[#allocation2 + $0x30] sm:$0xff] %vm230, 0.0
      %238 = vst.msk [vmem:[#allocation2 + $0x38] sm:$0xff] %vm230, 0.0
      %239 = vst.msk [vmem:[#allocation2 + $0x40] sm:$0xff] %vm230, 0.0
      %240 = vst.msk [vmem:[#allocation2 + $0x48] sm:$0xff] %vm230, 0.0
      %241 = vst.msk [vmem:[#allocation2 + $0x50] sm:$0xff] %vm230, 0.0
      %242 = vst.msk [vmem:[#allocation2 + $0x58] sm:$0xff] %vm230, 0.0
      %vm243 = vcmask 29696
      %244 = vst.msk [vmem:[#allocation2 + $0x60] sm:$0x3f] %vm243, 0.0
      %vm245 = vcmask 64512
      %246 = vst.msk [vmem:[#allocation3] sm:$0xff] %vm245, 0.0
      %247 = vst.msk [vmem:[#allocation3 + $0x8] sm:$0xff] %vm245, 0.0
      %248 = vst.msk [vmem:[#allocation3 + $0x10] sm:$0xff] %vm245, 0.0
      %249 = vst.msk [vmem:[#allocation3 + $0x18] sm:$0xff] %vm245, 0.0
      %250 = vst.msk [vmem:[#allocation3 + $0x20] sm:$0xff] %vm245, 0.0
      %251 = vst.msk [vmem:[#allocation3 + $0x28] sm:$0xff] %vm245, 0.0
      %252 = vst.msk [vmem:[#allocation3 + $0x30] sm:$0xff] %vm245, 0.0
      %253 = vst.msk [vmem:[#allocation3 + $0x38] sm:$0xff] %vm245, 0.0
      %254 = vst.msk [vmem:[#allocation3 + $0x40] sm:$0xff] %vm245, 0.0
      %255 = vst.msk [vmem:[#allocation3 + $0x48] sm:$0xff] %vm245, 0.0
      %256 = vst.msk [vmem:[#allocation3 + $0x50] sm:$0xff] %vm245, 0.0
      %257 = vst.msk [vmem:[#allocation3 + $0x58] sm:$0xff] %vm245, 0.0
      %vm258 = vcmask 62464
      %259 = vst.msk [vmem:[#allocation3 + $0x60] sm:$0x3f] %vm258, 0.0
      %v260 = vld [vmem:[%s223] sm:$0xff]
      %v261 = vld [vmem:[%s223 + $0x8] sm:$0xff]
      %v262 = vld [vmem:[%s223 + $0x10] sm:$0xff]
      %v263 = vld [vmem:[%s223 + $0x18] sm:$0xff]
      %v264 = vld [vmem:[%s223 + $0x20] sm:$0xff]
      %v265 = vld [vmem:[%s223 + $0x28] sm:$0xff]
      %v266 = vld [vmem:[%s223 + $0x30] sm:$0xff]
      %v267 = vld [vmem:[%s223 + $0x38] sm:$0xff]
      %v268 = vld [vmem:[%s223 + $0x40] sm:$0xff]
      %v269 = vld [vmem:[%s223 + $0x48] sm:$0xff]
      %v270 = vld [vmem:[%s223 + $0x50] sm:$0xff]
      %v271 = vld [vmem:[%s223 + $0x58] sm:$0xff]
      %v272 = vld [vmem:[%s223 + $0x60] sm:$0xff]
      %v273 = vld [vmem:[%s223 + $0x68] sm:$0xff]
      %v274 = vld [vmem:[%s223 + $0x70] sm:$0xff]
      %v275 = vld [vmem:[%s223 + $0x78] sm:$0xff]
      %v276 = vmax.f32 %v260, %v261
      %v277 = vmax.f32 %v262, %v263
      %v278 = vmax.f32 %v264, %v265
      %v279 = vmax.f32 %v266, %v267
      %v280 = vmax.f32 %v268, %v269
      %v281 = vmax.f32 %v270, %v271
      %v282 = vmax.f32 %v272, %v273
      %v283 = vmax.f32 %v274, %v275
      %292 = vrot.lane.b32.xlu0 %v276, 124
      %v293 = vpop.permute.xlu0 %292
      %294 = vrot.lane.b32.xlu0 %v277, 124
      %v295 = vpop.permute.xlu0 %294
      %296 = vrot.lane.b32.xlu0 %v278, 124
      %v297 = vpop.permute.xlu0 %296
      %298 = vrot.lane.b32.xlu0 %v279, 124
      %v299 = vpop.permute.xlu0 %298
      %300 = vrot.lane.b32.xlu0 %v280, 124
      %v301 = vpop.permute.xlu0 %300
      %302 = vrot.lane.b32.xlu0 %v281, 124
      %v303 = vpop.permute.xlu0 %302
      %304 = vrot.lane.b32.xlu0 %v282, 124
      %v305 = vpop.permute.xlu0 %304
      %306 = vrot.lane.b32.xlu0 %v283, 124
      %v307 = vpop.permute.xlu0 %306
      %v316 = vmax.f32 %v276, %v293
      %v317 = vmax.f32 %v277, %v295
      %v318 = vmax.f32 %v278, %v297
      %v319 = vmax.f32 %v279, %v299
      %v320 = vmax.f32 %v280, %v301
      %v321 = vmax.f32 %v281, %v303
      %v322 = vmax.f32 %v282, %v305
      %v323 = vmax.f32 %v283, %v307
      %324 = vst.msk [vmem:[#allocation2 + $0xb] sm:$0xff] %vm230, %v316
      %325 = vst.msk [vmem:[#allocation2 + $0x15] sm:$0xff] %vm230, %v317
      %326 = vst.msk [vmem:[#allocation2 + $0x1f] sm:$0xff] %vm230, %v318
      %327 = vst.msk [vmem:[#allocation2 + $0x29] sm:$0xff] %vm230, %v319
      %328 = vst.msk [vmem:[#allocation2 + $0x33] sm:$0xff] %vm230, %v320
      %329 = vst.msk [vmem:[#allocation2 + $0x3d] sm:$0xff] %vm230, %v321
      %330 = vst.msk [vmem:[#allocation2 + $0x47] sm:$0xff] %vm230, %v322
      %331 = vst.msk [vmem:[#allocation2 + $0x51] sm:$0xff] %vm230, %v323
      %v332 = vlaneseq
      %v333 = vshrl.u32 %v332, 7
      %v334 = vadd.s32 %v333, 8
      %v335 = vadd.s32 %v333, 16
      %v336 = vadd.s32 %v333, 24
      %v337 = vadd.s32 %v333, 32
      %v338 = vadd.s32 %v333, 40
      %v339 = vadd.s32 %v333, 48
      %v340 = vadd.s32 %v333, 56
      %v341 = vadd.s32 %v333, 64
      %v342 = vadd.s32 %v333, 72
      %vm343 = vcmp.lt.s32.totalorder %v333, 0
      %v344 = vsub.s32 0, %v333
      %v345 = vsel %vm343, %v344, %v333
      %v346 = vand.u32 %v345, 65535
      %v347 = vshrl.u32 %v345, 16
      %v349 = vmul.u32 %v346, 52429
      %v350 = vmul.u32 %v346, 52428
      %v351 = vmul.u32 %v347, 52429
      %v352 = vmul.u32 %v347, 52428
      %v353 = vshll.u32 %v350, 16
      %v354 = vshrl.u32 %v350, 16
      %v355 = vshll.u32 %v351, 16
      %v356 = vshrl.u32 %v351, 16
      %vm357 = vc.u32 %v349, %v353
      %v358 = vsel %vm357, 1, 0
      %v359 = vadd.s32 %v349, %v353
      %v360 = vadd.s32 %v352, %v358
      %vm361 = vc.u32 %v359, %v355
      %v362 = vsel %vm361, 1, 0
      %v363 = vadd.s32 %v359, %v355
      %v364 = vadd.s32 %v360, %v362
      %v365 = vadd.s32 %v364, %v354
      %v366 = vadd.s32 %v365, %v356
      %v367 = vshrl.u32 %v366, 3
      %v368 = vmul.u32 %v367, 10
      %v369 = vsub.s32 %v345, %v368
      %v370 = vsub.s32 0, %v369
      %v371 = vsel %vm343, %v370, %v369
      %vm372 = vcmp.lt.s32.totalorder %v334, 0
      %v373 = vsub.s32 0, %v334
      %v374 = vsel %vm372, %v373, %v334
      %v375 = vand.u32 %v374, 65535
      %v376 = vshrl.u32 %v374, 16
      %v378 = vmul.u32 %v375, 52429
      %v379 = vmul.u32 %v375, 52428
      %v380 = vmul.u32 %v376, 52429
      %v381 = vmul.u32 %v376, 52428
      %v382 = vshll.u32 %v379, 16
      %v383 = vshrl.u32 %v379, 16
      %v384 = vshll.u32 %v380, 16
      %v385 = vshrl.u32 %v380, 16
      %vm386 = vc.u32 %v378, %v382
      %v387 = vsel %vm386, 1, 0
      %v388 = vadd.s32 %v378, %v382
      %v389 = vadd.s32 %v381, %v387
      %vm390 = vc.u32 %v388, %v384
      %v391 = vsel %vm390, 1, 0
      %v392 = vadd.s32 %v388, %v384
      %v393 = vadd.s32 %v389, %v391
      %v394 = vadd.s32 %v393, %v383
      %v395 = vadd.s32 %v394, %v385
      %v396 = vshrl.u32 %v395, 3
      %v397 = vmul.u32 %v396, 10
      %v398 = vsub.s32 %v374, %v397
      %v399 = vsub.s32 0, %v398
      %v400 = vsel %vm372, %v399, %v398
      %vm401 = vcmp.lt.s32.totalorder %v335, 0
      %v402 = vsub.s32 0, %v335
      %v403 = vsel %vm401, %v402, %v335
      %v404 = vand.u32 %v403, 65535
      %v405 = vshrl.u32 %v403, 16
      %v407 = vmul.u32 %v404, 52429
      %v408 = vmul.u32 %v404, 52428
      %v409 = vmul.u32 %v405, 52429
      %v410 = vmul.u32 %v405, 52428
      %v411 = vshll.u32 %v408, 16
      %v412 = vshrl.u32 %v408, 16
      %v413 = vshll.u32 %v409, 16
      %v414 = vshrl.u32 %v409, 16
      %vm415 = vc.u32 %v407, %v411
      %v416 = vsel %vm415, 1, 0
      %v417 = vadd.s32 %v407, %v411
      %v418 = vadd.s32 %v410, %v416
      %vm419 = vc.u32 %v417, %v413
      %v420 = vsel %vm419, 1, 0
      %v421 = vadd.s32 %v417, %v413
      %v422 = vadd.s32 %v418, %v420
      %v423 = vadd.s32 %v422, %v412
      %v424 = vadd.s32 %v423, %v414
      %v425 = vshrl.u32 %v424, 3
      %v426 = vmul.u32 %v425, 10
      %v427 = vsub.s32 %v403, %v426
      %v428 = vsub.s32 0, %v427
      %v429 = vsel %vm401, %v428, %v427
      %vm430 = vcmp.lt.s32.totalorder %v336, 0
      %v431 = vsub.s32 0, %v336
      %v432 = vsel %vm430, %v431, %v336
      %v433 = vand.u32 %v432, 65535
      %v434 = vshrl.u32 %v432, 16
      %v436 = vmul.u32 %v433, 52429
      %v437 = vmul.u32 %v433, 52428
      %v438 = vmul.u32 %v434, 52429
      %v439 = vmul.u32 %v434, 52428
      %v440 = vshll.u32 %v437, 16
      %v441 = vshrl.u32 %v437, 16
      %v442 = vshll.u32 %v438, 16
      %v443 = vshrl.u32 %v438, 16
      %vm444 = vc.u32 %v436, %v440
      %v445 = vsel %vm444, 1, 0
      %v446 = vadd.s32 %v436, %v440
      %v447 = vadd.s32 %v439, %v445
      %vm448 = vc.u32 %v446, %v442
      %v449 = vsel %vm448, 1, 0
      %v450 = vadd.s32 %v446, %v442
      %v451 = vadd.s32 %v447, %v449
      %v452 = vadd.s32 %v451, %v441
      %v453 = vadd.s32 %v452, %v443
      %v454 = vshrl.u32 %v453, 3
      %v455 = vmul.u32 %v454, 10
      %v456 = vsub.s32 %v432, %v455
      %v457 = vsub.s32 0, %v456
      %v458 = vsel %vm430, %v457, %v456
      %vm459 = vcmp.lt.s32.totalorder %v337, 0
      %v460 = vsub.s32 0, %v337
      %v461 = vsel %vm459, %v460, %v337
      %v462 = vand.u32 %v461, 65535
      %v463 = vshrl.u32 %v461, 16
      %v465 = vmul.u32 %v462, 52429
      %v466 = vmul.u32 %v462, 52428
      %v467 = vmul.u32 %v463, 52429
      %v468 = vmul.u32 %v463, 52428
      %v469 = vshll.u32 %v466, 16
      %v470 = vshrl.u32 %v466, 16
      %v471 = vshll.u32 %v467, 16
      %v472 = vshrl.u32 %v467, 16
      %vm473 = vc.u32 %v465, %v469
      %v474 = vsel %vm473, 1, 0
      %v475 = vadd.s32 %v465, %v469
      %v476 = vadd.s32 %v468, %v474
      %vm477 = vc.u32 %v475, %v471
      %v478 = vsel %vm477, 1, 0
      %v479 = vadd.s32 %v475, %v471
      %v480 = vadd.s32 %v476, %v478
      %v481 = vadd.s32 %v480, %v470
      %v482 = vadd.s32 %v481, %v472
      %v483 = vshrl.u32 %v482, 3
      %v484 = vmul.u32 %v483, 10
      %v485 = vsub.s32 %v461, %v484
      %v486 = vsub.s32 0, %v485
      %v487 = vsel %vm459, %v486, %v485
      %vm488 = vcmp.lt.s32.totalorder %v338, 0
      %v489 = vsub.s32 0, %v338
      %v490 = vsel %vm488, %v489, %v338
      %v491 = vand.u32 %v490, 65535
      %v492 = vshrl.u32 %v490, 16
      %v494 = vmul.u32 %v491, 52429
      %v495 = vmul.u32 %v491, 52428
      %v496 = vmul.u32 %v492, 52429
      %v497 = vmul.u32 %v492, 52428
      %v498 = vshll.u32 %v495, 16
      %v499 = vshrl.u32 %v495, 16
      %v500 = vshll.u32 %v496, 16
      %v501 = vshrl.u32 %v496, 16
      %vm502 = vc.u32 %v494, %v498
      %v503 = vsel %vm502, 1, 0
      %v504 = vadd.s32 %v494, %v498
      %v505 = vadd.s32 %v497, %v503
      %vm506 = vc.u32 %v504, %v500
      %v507 = vsel %vm506, 1, 0
      %v508 = vadd.s32 %v504, %v500
      %v509 = vadd.s32 %v505, %v507
      %v510 = vadd.s32 %v509, %v499
      %v511 = vadd.s32 %v510, %v501
      %v512 = vshrl.u32 %v511, 3
      %v513 = vmul.u32 %v512, 10
      %v514 = vsub.s32 %v490, %v513
      %v515 = vsub.s32 0, %v514
      %v516 = vsel %vm488, %v515, %v514
      %vm517 = vcmp.lt.s32.totalorder %v339, 0
      %v518 = vsub.s32 0, %v339
      %v519 = vsel %vm517, %v518, %v339
      %v520 = vand.u32 %v519, 65535
      %v521 = vshrl.u32 %v519, 16
      %v523 = vmul.u32 %v520, 52429
      %v524 = vmul.u32 %v520, 52428
      %v525 = vmul.u32 %v521, 52429
      %v526 = vmul.u32 %v521, 52428
      %v527 = vshll.u32 %v524, 16
      %v528 = vshrl.u32 %v524, 16
      %v529 = vshll.u32 %v525, 16
      %v530 = vshrl.u32 %v525, 16
      %vm531 = vc.u32 %v523, %v527
      %v532 = vsel %vm531, 1, 0
      %v533 = vadd.s32 %v523, %v527
      %v534 = vadd.s32 %v526, %v532
      %vm535 = vc.u32 %v533, %v529
      %v536 = vsel %vm535, 1, 0
      %v537 = vadd.s32 %v533, %v529
      %v538 = vadd.s32 %v534, %v536
      %v539 = vadd.s32 %v538, %v528
      %v540 = vadd.s32 %v539, %v530
      %v541 = vshrl.u32 %v540, 3
      %v542 = vmul.u32 %v541, 10
      %v543 = vsub.s32 %v519, %v542
      %v544 = vsub.s32 0, %v543
      %v545 = vsel %vm517, %v544, %v543
      %vm546 = vcmp.lt.s32.totalorder %v340, 0
      %v547 = vsub.s32 0, %v340
      %v548 = vsel %vm546, %v547, %v340
      %v549 = vand.u32 %v548, 65535
      %v550 = vshrl.u32 %v548, 16
      %v552 = vmul.u32 %v549, 52429
      %v553 = vmul.u32 %v549, 52428
      %v554 = vmul.u32 %v550, 52429
      %v555 = vmul.u32 %v550, 52428
      %v556 = vshll.u32 %v553, 16
      %v557 = vshrl.u32 %v553, 16
      %v558 = vshll.u32 %v554, 16
      %v559 = vshrl.u32 %v554, 16
      %vm560 = vc.u32 %v552, %v556
      %v561 = vsel %vm560, 1, 0
      %v562 = vadd.s32 %v552, %v556
      %v563 = vadd.s32 %v555, %v561
      %vm564 = vc.u32 %v562, %v558
      %v565 = vsel %vm564, 1, 0
      %v566 = vadd.s32 %v562, %v558
      %v567 = vadd.s32 %v563, %v565
      %v568 = vadd.s32 %v567, %v557
      %v569 = vadd.s32 %v568, %v559
      %v570 = vshrl.u32 %v569, 3
      %v571 = vmul.u32 %v570, 10
      %v572 = vsub.s32 %v548, %v571
      %v573 = vsub.s32 0, %v572
      %v574 = vsel %vm546, %v573, %v572
      %vm575 = vcmp.lt.s32.totalorder %v341, 0
      %v576 = vsub.s32 0, %v341
      %v577 = vsel %vm575, %v576, %v341
      %v578 = vand.u32 %v577, 65535
      %v579 = vshrl.u32 %v577, 16
      %v581 = vmul.u32 %v578, 52429
      %v582 = vmul.u32 %v578, 52428
      %v583 = vmul.u32 %v579, 52429
      %v584 = vmul.u32 %v579, 52428
      %v585 = vshll.u32 %v582, 16
      %v586 = vshrl.u32 %v582, 16
      %v587 = vshll.u32 %v583, 16
      %v588 = vshrl.u32 %v583, 16
      %vm589 = vc.u32 %v581, %v585
      %v590 = vsel %vm589, 1, 0
      %v591 = vadd.s32 %v581, %v585
      %v592 = vadd.s32 %v584, %v590
      %vm593 = vc.u32 %v591, %v587
      %v594 = vsel %vm593, 1, 0
      %v595 = vadd.s32 %v591, %v587
      %v596 = vadd.s32 %v592, %v594
      %v597 = vadd.s32 %v596, %v586
      %v598 = vadd.s32 %v597, %v588
      %v599 = vshrl.u32 %v598, 3
      %v600 = vmul.u32 %v599, 10
      %v601 = vsub.s32 %v577, %v600
      %v602 = vsub.s32 0, %v601
      %v603 = vsel %vm575, %v602, %v601
      %vm604 = vcmp.lt.s32.totalorder %v342, 0
      %v605 = vsub.s32 0, %v342
      %v606 = vsel %vm604, %v605, %v342
      %v607 = vand.u32 %v606, 65535
      %v608 = vshrl.u32 %v606, 16
      %v610 = vmul.u32 %v607, 52429
      %v611 = vmul.u32 %v607, 52428
      %v612 = vmul.u32 %v608, 52429
      %v613 = vmul.u32 %v608, 52428
      %v614 = vshll.u32 %v611, 16
      %v615 = vshrl.u32 %v611, 16
      %v616 = vshll.u32 %v612, 16
      %v617 = vshrl.u32 %v612, 16
      %vm618 = vc.u32 %v610, %v614
      %v619 = vsel %vm618, 1, 0
      %v620 = vadd.s32 %v610, %v614
      %v621 = vadd.s32 %v613, %v619
      %vm622 = vc.u32 %v620, %v616
      %v623 = vsel %vm622, 1, 0
      %v624 = vadd.s32 %v620, %v616
      %v625 = vadd.s32 %v621, %v623
      %v626 = vadd.s32 %v625, %v615
      %v627 = vadd.s32 %v626, %v617
      %v628 = vshrl.u32 %v627, 3
      %v629 = vmul.u32 %v628, 10
      %v630 = vsub.s32 %v606, %v629
      %v631 = vsub.s32 0, %v630
      %v632 = vsel %vm604, %v631, %v630
      %vm633 = vcmp.ne.s32.totalorder %v371, 0
      %vm634 = vcmp.ne.s32.totalorder %v400, 0
      %vm635 = vcmp.ne.s32.totalorder %v429, 0
      %vm636 = vcmp.ne.s32.totalorder %v458, 0
      %vm637 = vcmp.ne.s32.totalorder %v487, 0
      %vm638 = vcmp.ne.s32.totalorder %v516, 0
      %vm639 = vcmp.ne.s32.totalorder %v545, 0
      %vm640 = vcmp.ne.s32.totalorder %v574, 0
      %vm641 = vcmp.ne.s32.totalorder %v603, 0
      %vm642 = vcmp.ne.s32.totalorder %v632, 0
      %vm643 = vcmp.lt.s32.totalorder %v371, 0
      %vm644 = vcmp.lt.s32.totalorder %v400, 0
      %vm645 = vcmp.lt.s32.totalorder %v429, 0
      %vm646 = vcmp.lt.s32.totalorder %v458, 0
      %vm647 = vcmp.lt.s32.totalorder %v487, 0
      %vm648 = vcmp.lt.s32.totalorder %v516, 0
      %vm649 = vcmp.lt.s32.totalorder %v545, 0
      %vm650 = vcmp.lt.s32.totalorder %v574, 0
      %vm651 = vcmp.lt.s32.totalorder %v603, 0
      %vm652 = vcmp.lt.s32.totalorder %v632, 0
      %vm653 = vmand %vm643, %vm633
      %vm654 = vmand %vm644, %vm634
      %vm655 = vmand %vm645, %vm635
      %vm656 = vmand %vm646, %vm636
      %vm657 = vmand %vm647, %vm637
      %vm658 = vmand %vm648, %vm638
      %vm659 = vmand %vm649, %vm639
      %vm660 = vmand %vm650, %vm640
      %vm661 = vmand %vm651, %vm641
      %vm662 = vmand %vm652, %vm642
      %v663 = vadd.s32 %v371, 10
      %v664 = vadd.s32 %v400, 10
      %v665 = vadd.s32 %v429, 10
      %v666 = vadd.s32 %v458, 10
      %v667 = vadd.s32 %v487, 10
      %v668 = vadd.s32 %v516, 10
      %v669 = vadd.s32 %v545, 10
      %v670 = vadd.s32 %v574, 10
      %v671 = vadd.s32 %v603, 10
      %v672 = vadd.s32 %v632, 10
      %v673 = vsel %vm653, %v663, %v371
      %v674 = vsel %vm654, %v664, %v400
      %v675 = vsel %vm655, %v665, %v429
      %v676 = vsel %vm656, %v666, %v458
      %v677 = vsel %vm657, %v667, %v487
      %v678 = vsel %vm658, %v668, %v516
      %v679 = vsel %vm659, %v669, %v545
      %v680 = vsel %vm660, %v670, %v574
      %v681 = vsel %vm661, %v671, %v603
      %v682 = vsel %vm662, %v672, %v632
      %vm683 = vcmp.lt.s32.totalorder %v673, 8
      %vm684 = vcmp.lt.s32.totalorder %v674, 8
      %vm685 = vcmp.lt.s32.totalorder %v675, 8
      %vm686 = vcmp.lt.s32.totalorder %v676, 8
      %vm687 = vcmp.lt.s32.totalorder %v677, 8
      %vm688 = vcmp.lt.s32.totalorder %v678, 8
      %vm689 = vcmp.lt.s32.totalorder %v679, 8
      %vm690 = vcmp.lt.s32.totalorder %v680, 8
      %vm691 = vcmp.lt.s32.totalorder %v681, 8
      %vm692 = vcmp.lt.s32.totalorder %v682, 8
      %v693 = vld [vmem:[#allocation2] sm:$0xff]
      %v694 = vld [vmem:[#allocation2 + $0x8] sm:$0xff]
      %v695 = vld [vmem:[#allocation2 + $0x10] sm:$0xff]
      %v696 = vld [vmem:[#allocation2 + $0x18] sm:$0xff]
      %v697 = vld [vmem:[#allocation2 + $0x20] sm:$0xff]
      %v698 = vld [vmem:[#allocation2 + $0x28] sm:$0xff]
      %v699 = vld [vmem:[#allocation2 + $0x30] sm:$0xff]
      %v700 = vld [vmem:[#allocation2 + $0x38] sm:$0xff]
      %v701 = vld [vmem:[#allocation2 + $0x40] sm:$0xff]
      %v702 = vld [vmem:[#allocation2 + $0x48] sm:$0xff]
      %v703 = vld [vmem:[%s1] sm:$0xf]
      %v704 = vld [vmem:[#allocation2 + $0x1] sm:$0xff]
      %v705 = vld [vmem:[#allocation2 + $0x9] sm:$0xff]
      %v706 = vld [vmem:[#allocation2 + $0x11] sm:$0xff]
      %v707 = vld [vmem:[#allocation2 + $0x19] sm:$0xff]
      %v708 = vld [vmem:[#allocation2 + $0x21] sm:$0xff]
      %v709 = vld [vmem:[#allocation2 + $0x29] sm:$0xff]
      %v710 = vld [vmem:[#allocation2 + $0x31] sm:$0xff]
      %v711 = vld [vmem:[#allocation2 + $0x39] sm:$0xff]
      %v712 = vld [vmem:[#allocation2 + $0x41] sm:$0xff]
      %v713 = vld [vmem:[#allocation2 + $0x49] sm:$0xff]
      %s714 = scalar_lea.vmem %s1, 4
      %v715 = vld [vmem:[%s714] sm:$0xf]
      %v717 = vsel %vm230, %v704, 0
      %v720 = vsel %vm230, %v705, 0
      %v723 = vsel %vm230, %v706, 0
      %v726 = vsel %vm230, %v707, 0
      %v729 = vsel %vm230, %v708, 0
      %v732 = vsel %vm230, %v709, 0
      %v735 = vsel %vm230, %v710, 0
      %v738 = vsel %vm230, %v711, 0
      %v741 = vsel %vm230, %v712, 0
      %v744 = vsel %vm230, %v713, 0
      %vm746 = vcmask 1043456
      %v748 = vsel %vm746, %v715, 0
      %750 = vmatpush.msra.mxu0 0.0
      %751 = vmatpush.msra.mxu0 0.0
      %752 = vmatpush.msra.mxu0 0.0
      %753 = vmatpush.msra.mxu0 0.0
      %754 = vmatpush.msra.mxu0 0.0
      %755 = vmatpush.msra.mxu0 0.0
      %756 = vmatpush.msra.mxu0 0.0
      %757 = vmatpush.msra.mxu0 0.0
      %758 = vmatpush.msra.mxu0 0.0
      %759 = vmatpush.msra.mxu0 0.0
      %760 = vmatpush.msra.mxu0 0.0
      %761 = vmatpush.msra.mxu0 0.0
      %762 = vmatpush.msra.mxu0 0.0
      %763 = vmatpush.msra.mxu0 0.0
      %764 = vmatpush.msra.mxu0 0.0
      %765 = vmatpush.msra.mxu0 %v748
      %766 = vmatmul.f32.gmra.mxu0 %v717
      %v767 = vpop.f32.mrf.mxu0
      %v768 = vadd.f32 0.0, %v767
      %769 = vmatmul.f32.gmra.mxu0 %v720
      %v770 = vpop.f32.mrf.mxu0
      %v771 = vadd.f32 0.0, %v770
      %772 = vmatmul.f32.gmra.mxu0 %v723
      %v773 = vpop.f32.mrf.mxu0
      %v774 = vadd.f32 0.0, %v773
      %775 = vmatmul.f32.gmra.mxu0 %v726
      %v776 = vpop.f32.mrf.mxu0
      %v777 = vadd.f32 0.0, %v776
      %778 = vmatmul.f32.gmra.mxu0 %v729
      %v779 = vpop.f32.mrf.mxu0
      %v780 = vadd.f32 0.0, %v779
      %781 = vmatmul.f32.gmra.mxu0 %v732
      %v782 = vpop.f32.mrf.mxu0
      %v783 = vadd.f32 0.0, %v782
      %784 = vmatmul.f32.gmra.mxu0 %v735
      %v785 = vpop.f32.mrf.mxu0
      %v786 = vadd.f32 0.0, %v785
      %787 = vmatmul.f32.gmra.mxu0 %v738
      %v788 = vpop.f32.mrf.mxu0
      %v789 = vadd.f32 0.0, %v788
      %790 = vmatmul.f32.gmra.mxu0 %v741
      %v791 = vpop.f32.mrf.mxu0
      %v792 = vadd.f32 0.0, %v791
      %793 = vmatmul.f32.gmra.mxu0 %v744
      %v794 = vpop.f32.mrf.mxu0
      %v795 = vadd.f32 0.0, %v794
      %796 = vdwg.mxu0
      %v798 = vsel %vm230, %v693, 0
      %v801 = vsel %vm230, %v694, 0
      %v804 = vsel %vm230, %v695, 0
      %v807 = vsel %vm230, %v696, 0
      %v810 = vsel %vm230, %v697, 0
      %v813 = vsel %vm230, %v698, 0
      %v816 = vsel %vm230, %v699, 0
      %v819 = vsel %vm230, %v700, 0
      %v822 = vsel %vm230, %v701, 0
      %v825 = vsel %vm230, %v702, 0
      %v828 = vsel %vm746, %v703, 0
      %830 = vmatpush.msra.mxu0 0.0
      %831 = vmatpush.msra.mxu0 0.0
      %832 = vmatpush.msra.mxu0 0.0
      %833 = vmatpush.msra.mxu0 0.0
      %834 = vmatpush.msra.mxu0 0.0
      %835 = vmatpush.msra.mxu0 0.0
      %836 = vmatpush.msra.mxu0 0.0
      %837 = vmatpush.msra.mxu0 0.0
      %838 = vmatpush.msra.mxu0 0.0
      %839 = vmatpush.msra.mxu0 0.0
      %840 = vmatpush.msra.mxu0 0.0
      %841 = vmatpush.msra.mxu0 0.0
      %842 = vmatpush.msra.mxu0 0.0
      %843 = vmatpush.msra.mxu0 0.0
      %844 = vmatpush.msra.mxu0 0.0
      %845 = vmatpush.msra.mxu0 %v828
      %846 = vmatmul.f32.gmra.mxu0 %v798
      %v847 = vpop.f32.mrf.mxu0
      %v848 = vadd.f32 %v768, %v847
      %849 = vmatmul.f32.gmra.mxu0 %v801
      %v850 = vpop.f32.mrf.mxu0
      %v851 = vadd.f32 %v771, %v850
      %852 = vmatmul.f32.gmra.mxu0 %v804
      %v853 = vpop.f32.mrf.mxu0
      %v854 = vadd.f32 %v774, %v853
      %855 = vmatmul.f32.gmra.mxu0 %v807
      %v856 = vpop.f32.mrf.mxu0
      %v857 = vadd.f32 %v777, %v856
      %858 = vmatmul.f32.gmra.mxu0 %v810
      %v859 = vpop.f32.mrf.mxu0
      %v860 = vadd.f32 %v780, %v859
      %861 = vmatmul.f32.gmra.mxu0 %v813
      %v862 = vpop.f32.mrf.mxu0
      %v863 = vadd.f32 %v783, %v862
      %864 = vmatmul.f32.gmra.mxu0 %v816
      %v865 = vpop.f32.mrf.mxu0
      %v866 = vadd.f32 %v786, %v865
      %867 = vmatmul.f32.gmra.mxu0 %v819
      %v868 = vpop.f32.mrf.mxu0
      %v869 = vadd.f32 %v789, %v868
      %870 = vmatmul.f32.gmra.mxu0 %v822
      %v871 = vpop.f32.mrf.mxu0
      %v872 = vadd.f32 %v792, %v871
      %873 = vmatmul.f32.gmra.mxu0 %v825
      %v874 = vpop.f32.mrf.mxu0
      %v875 = vadd.f32 %v795, %v874
      %876 = vdwg.mxu0
      %v877 = vld [vmem:[#allocation2 + $0x2] sm:$0xff]
      %v878 = vld [vmem:[#allocation2 + $0xa] sm:$0xff]
      %v879 = vld [vmem:[#allocation2 + $0x12] sm:$0xff]
      %v880 = vld [vmem:[#allocation2 + $0x1a] sm:$0xff]
      %v881 = vld [vmem:[#allocation2 + $0x22] sm:$0xff]
      %v882 = vld [vmem:[#allocation2 + $0x2a] sm:$0xff]
      %v883 = vld [vmem:[#allocation2 + $0x32] sm:$0xff]
      %v884 = vld [vmem:[#allocation2 + $0x3a] sm:$0xff]
      %v885 = vld [vmem:[#allocation2 + $0x42] sm:$0xff]
      %v886 = vld [vmem:[#allocation2 + $0x4a] sm:$0xff]
      %s887 = scalar_lea.vmem %s1, 8
      %v888 = vld [vmem:[%s887] sm:$0xf]
      %v890 = vsel %vm230, %v877, 0
      %v893 = vsel %vm230, %v878, 0
      %v896 = vsel %vm230, %v879, 0
      %v899 = vsel %vm230, %v880, 0
      %v902 = vsel %vm230, %v881, 0
      %v905 = vsel %vm230, %v882, 0
      %v908 = vsel %vm230, %v883, 0
      %v911 = vsel %vm230, %v884, 0
      %v914 = vsel %vm230, %v885, 0
      %v917 = vsel %vm230, %v886, 0
      %v920 = vsel %vm746, %v888, 0
      %922 = vmatpush.msra.mxu0 0.0
      %923 = vmatpush.msra.mxu0 0.0
      %924 = vmatpush.msra.mxu0 0.0
      %925 = vmatpush.msra.mxu0 0.0
      %926 = vmatpush.msra.mxu0 0.0
      %927 = vmatpush.msra.mxu0 0.0
      %928 = vmatpush.msra.mxu0 0.0
      %929 = vmatpush.msra.mxu0 0.0
      %930 = vmatpush.msra.mxu0 0.0
      %931 = vmatpush.msra.mxu0 0.0
      %932 = vmatpush.msra.mxu0 0.0
      %933 = vmatpush.msra.mxu0 0.0
      %934 = vmatpush.msra.mxu0 0.0
      %935 = vmatpush.msra.mxu0 0.0
      %936 = vmatpush.msra.mxu0 0.0
      %937 = vmatpush.msra.mxu0 %v920
      %938 = vmatmul.f32.gmra.mxu0 %v890
      %v939 = vpop.f32.mrf.mxu0
      %v940 = vadd.f32 0.0, %v939
      %941 = vmatmul.f32.gmra.mxu0 %v893
      %v942 = vpop.f32.mrf.mxu0
      %v943 = vadd.f32 0.0, %v942
      %944 = vmatmul.f32.gmra.mxu0 %v896
      %v945 = vpop.f32.mrf.mxu0
      %v946 = vadd.f32 0.0, %v945
      %947 = vmatmul.f32.gmra.mxu0 %v899
      %v948 = vpop.f32.mrf.mxu0
      %v949 = vadd.f32 0.0, %v948
      %950 = vmatmul.f32.gmra.mxu0 %v902
      %v951 = vpop.f32.mrf.mxu0
      %v952 = vadd.f32 0.0, %v951
      %953 = vmatmul.f32.gmra.mxu0 %v905
      %v954 = vpop.f32.mrf.mxu0
      %v955 = vadd.f32 0.0, %v954
      %956 = vmatmul.f32.gmra.mxu0 %v908
      %v957 = vpop.f32.mrf.mxu0
      %v958 = vadd.f32 0.0, %v957
      %959 = vmatmul.f32.gmra.mxu0 %v911
      %v960 = vpop.f32.mrf.mxu0
      %v961 = vadd.f32 0.0, %v960
      %962 = vmatmul.f32.gmra.mxu0 %v914
      %v963 = vpop.f32.mrf.mxu0
      %v964 = vadd.f32 0.0, %v963
      %965 = vmatmul.f32.gmra.mxu0 %v917
      %v966 = vpop.f32.mrf.mxu0
      %v967 = vadd.f32 0.0, %v966
      %968 = vdwg.mxu0
      %v969 = vadd.f32 %v848, %v940
      %v970 = vadd.f32 %v851, %v943
      %v971 = vadd.f32 %v854, %v946
      %v972 = vadd.f32 %v857, %v949
      %v973 = vadd.f32 %v860, %v952
      %v974 = vadd.f32 %v863, %v955
      %v975 = vadd.f32 %v866, %v958
      %v976 = vadd.f32 %v869, %v961
      %v977 = vadd.f32 %v872, %v964
      %v978 = vadd.f32 %v875, %v967
      %v979 = vld [vmem:[#allocation2 + $0xa] sm:$0xff]
      %v980 = vld [vmem:[#allocation2 + $0x12] sm:$0xff]
      %v981 = vld [vmem:[#allocation2 + $0x1a] sm:$0xff]
      %v982 = vld [vmem:[#allocation2 + $0x22] sm:$0xff]
      %v983 = vld [vmem:[#allocation2 + $0x2a] sm:$0xff]
      %v984 = vld [vmem:[#allocation2 + $0x32] sm:$0xff]
      %v985 = vld [vmem:[#allocation2 + $0x3a] sm:$0xff]
      %v986 = vld [vmem:[#allocation2 + $0x42] sm:$0xff]
      %v987 = vld [vmem:[#allocation2 + $0x4a] sm:$0xff]
      %v988 = vld [vmem:[#allocation2 + $0x52] sm:$0xff]
      %s989 = scalar_lea.vmem %s1, 12
      %v990 = vld [vmem:[%s989] sm:$0xf]
      %v992 = vsel %vm230, %v979, 0
      %v995 = vsel %vm230, %v980, 0
      %v998 = vsel %vm230, %v981, 0
      %v1001 = vsel %vm230, %v982, 0
      %v1004 = vsel %vm230, %v983, 0
      %v1007 = vsel %vm230, %v984, 0
      %v1010 = vsel %vm230, %v985, 0
      %v1013 = vsel %vm230, %v986, 0
      %v1016 = vsel %vm230, %v987, 0
      %v1019 = vsel %vm230, %v988, 0
      %v1022 = vsel %vm746, %v990, 0
      %1024 = vmatpush.msra.mxu0 0.0
      %1025 = vmatpush.msra.mxu0 0.0
      %1026 = vmatpush.msra.mxu0 0.0
      %1027 = vmatpush.msra.mxu0 0.0
      %1028 = vmatpush.msra.mxu0 0.0
      %1029 = vmatpush.msra.mxu0 0.0
      %1030 = vmatpush.msra.mxu0 0.0
      %1031 = vmatpush.msra.mxu0 0.0
      %1032 = vmatpush.msra.mxu0 0.0
      %1033 = vmatpush.msra.mxu0 0.0
      %1034 = vmatpush.msra.mxu0 0.0
      %1035 = vmatpush.msra.mxu0 0.0
      %1036 = vmatpush.msra.mxu0 0.0
      %1037 = vmatpush.msra.mxu0 0.0
      %1038 = vmatpush.msra.mxu0 0.0
      %1039 = vmatpush.msra.mxu0 %v1022
      %1040 = vmatmul.f32.gmra.mxu0 %v992
      %v1041 = vpop.f32.mrf.mxu0
      %v1042 = vadd.f32 0.0, %v1041
      %1043 = vmatmul.f32.gmra.mxu0 %v995
      %v1044 = vpop.f32.mrf.mxu0
      %v1045 = vadd.f32 0.0, %v1044
      %1046 = vmatmul.f32.gmra.mxu0 %v998
      %v1047 = vpop.f32.mrf.mxu0
      %v1048 = vadd.f32 0.0, %v1047
      %1049 = vmatmul.f32.gmra.mxu0 %v1001
      %v1050 = vpop.f32.mrf.mxu0
      %v1051 = vadd.f32 0.0, %v1050
      %1052 = vmatmul.f32.gmra.mxu0 %v1004
      %v1053 = vpop.f32.mrf.mxu0
      %v1054 = vadd.f32 0.0, %v1053
      %1055 = vmatmul.f32.gmra.mxu0 %v1007
      %v1056 = vpop.f32.mrf.mxu0
      %v1057 = vadd.f32 0.0, %v1056
      %1058 = vmatmul.f32.gmra.mxu0 %v1010
      %v1059 = vpop.f32.mrf.mxu0
      %v1060 = vadd.f32 0.0, %v1059
      %1061 = vmatmul.f32.gmra.mxu0 %v1013
      %v1062 = vpop.f32.mrf.mxu0
      %v1063 = vadd.f32 0.0, %v1062
      %1064 = vmatmul.f32.gmra.mxu0 %v1016
      %v1065 = vpop.f32.mrf.mxu0
      %v1066 = vadd.f32 0.0, %v1065
      %1067 = vmatmul.f32.gmra.mxu0 %v1019
      %v1068 = vpop.f32.mrf.mxu0
      %v1069 = vadd.f32 0.0, %v1068
      %1070 = vdwg.mxu0
      %v1071 = vadd.f32 %v969, %v1042
      %v1072 = vadd.f32 %v970, %v1045
      %v1073 = vadd.f32 %v971, %v1048
      %v1074 = vadd.f32 %v972, %v1051
      %v1075 = vadd.f32 %v973, %v1054
      %v1076 = vadd.f32 %v974, %v1057
      %v1077 = vadd.f32 %v975, %v1060
      %v1078 = vadd.f32 %v976, %v1063
      %v1079 = vadd.f32 %v977, %v1066
      %v1080 = vadd.f32 %v978, %v1069
      %v1081 = vld [vmem:[#allocation2 + $0xb] sm:$0xff]
      %v1082 = vld [vmem:[#allocation2 + $0x13] sm:$0xff]
      %v1083 = vld [vmem:[#allocation2 + $0x1b] sm:$0xff]
      %v1084 = vld [vmem:[#allocation2 + $0x23] sm:$0xff]
      %v1085 = vld [vmem:[#allocation2 + $0x2b] sm:$0xff]
      %v1086 = vld [vmem:[#allocation2 + $0x33] sm:$0xff]
      %v1087 = vld [vmem:[#allocation2 + $0x3b] sm:$0xff]
      %v1088 = vld [vmem:[#allocation2 + $0x43] sm:$0xff]
      %v1089 = vld [vmem:[#allocation2 + $0x4b] sm:$0xff]
      %v1090 = vld [vmem:[#allocation2 + $0x53] sm:$0xff]
      %s1091 = scalar_lea.vmem %s1, 16
      %v1092 = vld [vmem:[%s1091] sm:$0xf]
      %v1094 = vsel %vm230, %v1081, 0
      %v1097 = vsel %vm230, %v1082, 0
      %v1100 = vsel %vm230, %v1083, 0
      %v1103 = vsel %vm230, %v1084, 0
      %v1106 = vsel %vm230, %v1085, 0
      %v1109 = vsel %vm230, %v1086, 0
      %v1112 = vsel %vm230, %v1087, 0
      %v1115 = vsel %vm230, %v1088, 0
      %v1118 = vsel %vm230, %v1089, 0
      %v1121 = vsel %vm230, %v1090, 0
      %v1124 = vsel %vm746, %v1092, 0
      %1126 = vmatpush.msra.mxu0 0.0
      %1127 = vmatpush.msra.mxu0 0.0
      %1128 = vmatpush.msra.mxu0 0.0
      %1129 = vmatpush.msra.mxu0 0.0
      %1130 = vmatpush.msra.mxu0 0.0
      %1131 = vmatpush.msra.mxu0 0.0
      %1132 = vmatpush.msra.mxu0 0.0
      %1133 = vmatpush.msra.mxu0 0.0
      %1134 = vmatpush.msra.mxu0 0.0
      %1135 = vmatpush.msra.mxu0 0.0
      %1136 = vmatpush.msra.mxu0 0.0
      %1137 = vmatpush.msra.mxu0 0.0
      %1138 = vmatpush.msra.mxu0 0.0
      %1139 = vmatpush.msra.mxu0 0.0
      %1140 = vmatpush.msra.mxu0 0.0
      %1141 = vmatpush.msra.mxu0 %v1124
      %1142 = vmatmul.f32.gmra.mxu0 %v1094
      %v1143 = vpop.f32.mrf.mxu0
      %v1144 = vadd.f32 0.0, %v1143
      %1145 = vmatmul.f32.gmra.mxu0 %v1097
      %v1146 = vpop.f32.mrf.mxu0
      %v1147 = vadd.f32 0.0, %v1146
      %1148 = vmatmul.f32.gmra.mxu0 %v1100
      %v1149 = vpop.f32.mrf.mxu0
      %v1150 = vadd.f32 0.0, %v1149
      %1151 = vmatmul.f32.gmra.mxu0 %v1103
      %v1152 = vpop.f32.mrf.mxu0
      %v1153 = vadd.f32 0.0, %v1152
      %1154 = vmatmul.f32.gmra.mxu0 %v1106
      %v1155 = vpop.f32.mrf.mxu0
      %v1156 = vadd.f32 0.0, %v1155
      %1157 = vmatmul.f32.gmra.mxu0 %v1109
      %v1158 = vpop.f32.mrf.mxu0
      %v1159 = vadd.f32 0.0, %v1158
      %1160 = vmatmul.f32.gmra.mxu0 %v1112
      %v1161 = vpop.f32.mrf.mxu0
      %v1162 = vadd.f32 0.0, %v1161
      %1163 = vmatmul.f32.gmra.mxu0 %v1115
      %v1164 = vpop.f32.mrf.mxu0
      %v1165 = vadd.f32 0.0, %v1164
      %1166 = vmatmul.f32.gmra.mxu0 %v1118
      %v1167 = vpop.f32.mrf.mxu0
      %v1168 = vadd.f32 0.0, %v1167
      %1169 = vmatmul.f32.gmra.mxu0 %v1121
      %v1170 = vpop.f32.mrf.mxu0
      %v1171 = vadd.f32 0.0, %v1170
      %1172 = vdwg.mxu0
      %v1173 = vadd.f32 %v1071, %v1144
      %v1174 = vadd.f32 %v1072, %v1147
      %v1175 = vadd.f32 %v1073, %v1150
      %v1176 = vadd.f32 %v1074, %v1153
      %v1177 = vadd.f32 %v1075, %v1156
      %v1178 = vadd.f32 %v1076, %v1159
      %v1179 = vadd.f32 %v1077, %v1162
      %v1180 = vadd.f32 %v1078, %v1165
      %v1181 = vadd.f32 %v1079, %v1168
      %v1182 = vadd.f32 %v1080, %v1171
      %v1183 = vld [vmem:[#allocation2 + $0xc] sm:$0xff]
      %v1184 = vld [vmem:[#allocation2 + $0x14] sm:$0xff]
      %v1185 = vld [vmem:[#allocation2 + $0x1c] sm:$0xff]
      %v1186 = vld [vmem:[#allocation2 + $0x24] sm:$0xff]
      %v1187 = vld [vmem:[#allocation2 + $0x2c] sm:$0xff]
      %v1188 = vld [vmem:[#allocation2 + $0x34] sm:$0xff]
      %v1189 = vld [vmem:[#allocation2 + $0x3c] sm:$0xff]
      %v1190 = vld [vmem:[#allocation2 + $0x44] sm:$0xff]
      %v1191 = vld [vmem:[#allocation2 + $0x4c] sm:$0xff]
      %v1192 = vld [vmem:[#allocation2 + $0x54] sm:$0xff]
      %s1193 = scalar_lea.vmem %s1, 20
      %v1194 = vld [vmem:[%s1193] sm:$0xf]
      %v1196 = vsel %vm230, %v1183, 0
      %v1199 = vsel %vm230, %v1184, 0
      %v1202 = vsel %vm230, %v1185, 0
      %v1205 = vsel %vm230, %v1186, 0
      %v1208 = vsel %vm230, %v1187, 0
      %v1211 = vsel %vm230, %v1188, 0
      %v1214 = vsel %vm230, %v1189, 0
      %v1217 = vsel %vm230, %v1190, 0
      %v1220 = vsel %vm230, %v1191, 0
      %v1223 = vsel %vm230, %v1192, 0
      %v1226 = vsel %vm746, %v1194, 0
      %1228 = vmatpush.msra.mxu0 0.0
      %1229 = vmatpush.msra.mxu0 0.0
      %1230 = vmatpush.msra.mxu0 0.0
      %1231 = vmatpush.msra.mxu0 0.0
      %1232 = vmatpush.msra.mxu0 0.0
      %1233 = vmatpush.msra.mxu0 0.0
      %1234 = vmatpush.msra.mxu0 0.0
      %1235 = vmatpush.msra.mxu0 0.0
      %1236 = vmatpush.msra.mxu0 0.0
      %1237 = vmatpush.msra.mxu0 0.0
      %1238 = vmatpush.msra.mxu0 0.0
      %1239 = vmatpush.msra.mxu0 0.0
      %1240 = vmatpush.msra.mxu0 0.0
      %1241 = vmatpush.msra.mxu0 0.0
      %1242 = vmatpush.msra.mxu0 0.0
      %1243 = vmatpush.msra.mxu0 %v1226
      %1244 = vmatmul.f32.gmra.mxu0 %v1196
      %v1245 = vpop.f32.mrf.mxu0
      %v1246 = vadd.f32 0.0, %v1245
      %1247 = vmatmul.f32.gmra.mxu0 %v1199
      %v1248 = vpop.f32.mrf.mxu0
      %v1249 = vadd.f32 0.0, %v1248
      %1250 = vmatmul.f32.gmra.mxu0 %v1202
      %v1251 = vpop.f32.mrf.mxu0
      %v1252 = vadd.f32 0.0, %v1251
      %1253 = vmatmul.f32.gmra.mxu0 %v1205
      %v1254 = vpop.f32.mrf.mxu0
      %v1255 = vadd.f32 0.0, %v1254
      %1256 = vmatmul.f32.gmra.mxu0 %v1208
      %v1257 = vpop.f32.mrf.mxu0
      %v1258 = vadd.f32 0.0, %v1257
      %1259 = vmatmul.f32.gmra.mxu0 %v1211
      %v1260 = vpop.f32.mrf.mxu0
      %v1261 = vadd.f32 0.0, %v1260
      %1262 = vmatmul.f32.gmra.mxu0 %v1214
      %v1263 = vpop.f32.mrf.mxu0
      %v1264 = vadd.f32 0.0, %v1263
      %1265 = vmatmul.f32.gmra.mxu0 %v1217
      %v1266 = vpop.f32.mrf.mxu0
      %v1267 = vadd.f32 0.0, %v1266
      %1268 = vmatmul.f32.gmra.mxu0 %v1220
      %v1269 = vpop.f32.mrf.mxu0
      %v1270 = vadd.f32 0.0, %v1269
      %1271 = vmatmul.f32.gmra.mxu0 %v1223
      %v1272 = vpop.f32.mrf.mxu0
      %v1273 = vadd.f32 0.0, %v1272
      %1274 = vdwg.mxu0
      %v1275 = vadd.f32 %v1173, %v1246
      %v1276 = vadd.f32 %v1174, %v1249
      %v1277 = vadd.f32 %v1175, %v1252
      %v1278 = vadd.f32 %v1176, %v1255
      %v1279 = vadd.f32 %v1177, %v1258
      %v1280 = vadd.f32 %v1178, %v1261
      %v1281 = vadd.f32 %v1179, %v1264
      %v1282 = vadd.f32 %v1180, %v1267
      %v1283 = vadd.f32 %v1181, %v1270
      %v1284 = vadd.f32 %v1182, %v1273
      %v1285 = vld [vmem:[#allocation2 + $0x14] sm:$0xff]
      %v1286 = vld [vmem:[#allocation2 + $0x1c] sm:$0xff]
      %v1287 = vld [vmem:[#allocation2 + $0x24] sm:$0xff]
      %v1288 = vld [vmem:[#allocation2 + $0x2c] sm:$0xff]
      %v1289 = vld [vmem:[#allocation2 + $0x34] sm:$0xff]
      %v1290 = vld [vmem:[#allocation2 + $0x3c] sm:$0xff]
      %v1291 = vld [vmem:[#allocation2 + $0x44] sm:$0xff]
      %v1292 = vld [vmem:[#allocation2 + $0x4c] sm:$0xff]
      %v1293 = vld [vmem:[#allocation2 + $0x54] sm:$0xff]
      %v1294 = vld [vmem:[#allocation2 + $0x5c] sm:$0xff]
      %s1295 = scalar_lea.vmem %s1, 24
      %v1296 = vld [vmem:[%s1295] sm:$0xf]
      %v1298 = vsel %vm230, %v1285, 0
      %v1301 = vsel %vm230, %v1286, 0
      %v1304 = vsel %vm230, %v1287, 0
      %v1307 = vsel %vm230, %v1288, 0
      %v1310 = vsel %vm230, %v1289, 0
      %v1313 = vsel %vm230, %v1290, 0
      %v1316 = vsel %vm230, %v1291, 0
      %v1319 = vsel %vm230, %v1292, 0
      %v1322 = vsel %vm230, %v1293, 0
      %v1325 = vsel %vm230, %v1294, 0
      %v1328 = vsel %vm746, %v1296, 0
      %1330 = vmatpush.msra.mxu0 0.0
      %1331 = vmatpush.msra.mxu0 0.0
      %1332 = vmatpush.msra.mxu0 0.0
      %1333 = vmatpush.msra.mxu0 0.0
      %1334 = vmatpush.msra.mxu0 0.0
      %1335 = vmatpush.msra.mxu0 0.0
      %1336 = vmatpush.msra.mxu0 0.0
      %1337 = vmatpush.msra.mxu0 0.0
      %1338 = vmatpush.msra.mxu0 0.0
      %1339 = vmatpush.msra.mxu0 0.0
      %1340 = vmatpush.msra.mxu0 0.0
      %1341 = vmatpush.msra.mxu0 0.0
      %1342 = vmatpush.msra.mxu0 0.0
      %1343 = vmatpush.msra.mxu0 0.0
      %1344 = vmatpush.msra.mxu0 0.0
      %1345 = vmatpush.msra.mxu0 %v1328
      %1346 = vmatmul.f32.gmra.mxu0 %v1298
      %v1347 = vpop.f32.mrf.mxu0
      %v1348 = vadd.f32 0.0, %v1347
      %1349 = vmatmul.f32.gmra.mxu0 %v1301
      %v1350 = vpop.f32.mrf.mxu0
      %v1351 = vadd.f32 0.0, %v1350
      %1352 = vmatmul.f32.gmra.mxu0 %v1304
      %v1353 = vpop.f32.mrf.mxu0
      %v1354 = vadd.f32 0.0, %v1353
      %1355 = vmatmul.f32.gmra.mxu0 %v1307
      %v1356 = vpop.f32.mrf.mxu0
      %v1357 = vadd.f32 0.0, %v1356
      %1358 = vmatmul.f32.gmra.mxu0 %v1310
      %v1359 = vpop.f32.mrf.mxu0
      %v1360 = vadd.f32 0.0, %v1359
      %1361 = vmatmul.f32.gmra.mxu0 %v1313
      %v1362 = vpop.f32.mrf.mxu0
      %v1363 = vadd.f32 0.0, %v1362
      %1364 = vmatmul.f32.gmra.mxu0 %v1316
      %v1365 = vpop.f32.mrf.mxu0
      %v1366 = vadd.f32 0.0, %v1365
      %1367 = vmatmul.f32.gmra.mxu0 %v1319
      %v1368 = vpop.f32.mrf.mxu0
      %v1369 = vadd.f32 0.0, %v1368
      %1370 = vmatmul.f32.gmra.mxu0 %v1322
      %v1371 = vpop.f32.mrf.mxu0
      %v1372 = vadd.f32 0.0, %v1371
      %1373 = vmatmul.f32.gmra.mxu0 %v1325
      %v1374 = vpop.f32.mrf.mxu0
      %v1375 = vadd.f32 0.0, %v1374
      %1376 = vdwg.mxu0
      %v1377 = vadd.f32 %v1275, %v1348
      %v1378 = vadd.f32 %v1276, %v1351
      %v1379 = vadd.f32 %v1277, %v1354
      %v1380 = vadd.f32 %v1278, %v1357
      %v1381 = vadd.f32 %v1279, %v1360
      %v1382 = vadd.f32 %v1280, %v1363
      %v1383 = vadd.f32 %v1281, %v1366
      %v1384 = vadd.f32 %v1282, %v1369
      %v1385 = vadd.f32 %v1283, %v1372
      %v1386 = vadd.f32 %v1284, %v1375
      %v1387 = vld [vmem:[#allocation2 + $0x15] sm:$0xff]
      %v1388 = vld [vmem:[#allocation2 + $0x1d] sm:$0xff]
      %v1389 = vld [vmem:[#allocation2 + $0x25] sm:$0xff]
      %v1390 = vld [vmem:[#allocation2 + $0x2d] sm:$0xff]
      %v1391 = vld [vmem:[#allocation2 + $0x35] sm:$0xff]
      %v1392 = vld [vmem:[#allocation2 + $0x3d] sm:$0xff]
      %v1393 = vld [vmem:[#allocation2 + $0x45] sm:$0xff]
      %v1394 = vld [vmem:[#allocation2 + $0x4d] sm:$0xff]
      %v1395 = vld [vmem:[#allocation2 + $0x55] sm:$0xff]
      %v1396 = vld [vmem:[#allocation2 + $0x5d] sm:$0xff]
      %s1397 = scalar_lea.vmem %s1, 28
      %v1398 = vld [vmem:[%s1397] sm:$0xf]
      %v1400 = vsel %vm230, %v1387, 0
      %v1403 = vsel %vm230, %v1388, 0
      %v1406 = vsel %vm230, %v1389, 0
      %v1409 = vsel %vm230, %v1390, 0
      %v1412 = vsel %vm230, %v1391, 0
      %v1415 = vsel %vm230, %v1392, 0
      %v1418 = vsel %vm230, %v1393, 0
      %v1421 = vsel %vm230, %v1394, 0
      %v1424 = vsel %vm230, %v1395, 0
      %v1427 = vsel %vm230, %v1396, 0
      %v1430 = vsel %vm746, %v1398, 0
      %1432 = vmatpush.msra.mxu0 0.0
      %1433 = vmatpush.msra.mxu0 0.0
      %1434 = vmatpush.msra.mxu0 0.0
      %1435 = vmatpush.msra.mxu0 0.0
      %1436 = vmatpush.msra.mxu0 0.0
      %1437 = vmatpush.msra.mxu0 0.0
      %1438 = vmatpush.msra.mxu0 0.0
      %1439 = vmatpush.msra.mxu0 0.0
      %1440 = vmatpush.msra.mxu0 0.0
      %1441 = vmatpush.msra.mxu0 0.0
      %1442 = vmatpush.msra.mxu0 0.0
      %1443 = vmatpush.msra.mxu0 0.0
      %1444 = vmatpush.msra.mxu0 0.0
      %1445 = vmatpush.msra.mxu0 0.0
      %1446 = vmatpush.msra.mxu0 0.0
      %1447 = vmatpush.msra.mxu0 %v1430
      %1448 = vmatmul.f32.gmra.mxu0 %v1400
      %v1449 = vpop.f32.mrf.mxu0
      %v1450 = vadd.f32 0.0, %v1449
      %1451 = vmatmul.f32.gmra.mxu0 %v1403
      %v1452 = vpop.f32.mrf.mxu0
      %v1453 = vadd.f32 0.0, %v1452
      %1454 = vmatmul.f32.gmra.mxu0 %v1406
      %v1455 = vpop.f32.mrf.mxu0
      %v1456 = vadd.f32 0.0, %v1455
      %1457 = vmatmul.f32.gmra.mxu0 %v1409
      %v1458 = vpop.f32.mrf.mxu0
      %v1459 = vadd.f32 0.0, %v1458
      %1460 = vmatmul.f32.gmra.mxu0 %v1412
      %v1461 = vpop.f32.mrf.mxu0
      %v1462 = vadd.f32 0.0, %v1461
      %1463 = vmatmul.f32.gmra.mxu0 %v1415
      %v1464 = vpop.f32.mrf.mxu0
      %v1465 = vadd.f32 0.0, %v1464
      %1466 = vmatmul.f32.gmra.mxu0 %v1418
      %v1467 = vpop.f32.mrf.mxu0
      %v1468 = vadd.f32 0.0, %v1467
      %1469 = vmatmul.f32.gmra.mxu0 %v1421
      %v1470 = vpop.f32.mrf.mxu0
      %v1471 = vadd.f32 0.0, %v1470
      %1472 = vmatmul.f32.gmra.mxu0 %v1424
      %v1473 = vpop.f32.mrf.mxu0
      %v1474 = vadd.f32 0.0, %v1473
      %1475 = vmatmul.f32.gmra.mxu0 %v1427
      %v1476 = vpop.f32.mrf.mxu0
      %v1477 = vadd.f32 0.0, %v1476
      %1478 = vdwg.mxu0
      %v1479 = vadd.f32 %v1377, %v1450
      %v1480 = vadd.f32 %v1378, %v1453
      %v1481 = vadd.f32 %v1379, %v1456
      %v1482 = vadd.f32 %v1380, %v1459
      %v1483 = vadd.f32 %v1381, %v1462
      %v1484 = vadd.f32 %v1382, %v1465
      %v1485 = vadd.f32 %v1383, %v1468
      %v1486 = vadd.f32 %v1384, %v1471
      %v1487 = vadd.f32 %v1385, %v1474
      %v1488 = vadd.f32 %v1386, %v1477
      %v1489 = vld [vmem:[#allocation2 + $0x16] sm:$0xff]
      %v1490 = vld [vmem:[#allocation2 + $0x1e] sm:$0xff]
      %v1491 = vld [vmem:[#allocation2 + $0x26] sm:$0xff]
      %v1492 = vld [vmem:[#allocation2 + $0x2e] sm:$0xff]
      %v1493 = vld [vmem:[#allocation2 + $0x36] sm:$0xff]
      %v1494 = vld [vmem:[#allocation2 + $0x3e] sm:$0xff]
      %v1495 = vld [vmem:[#allocation2 + $0x46] sm:$0xff]
      %v1496 = vld [vmem:[#allocation2 + $0x4e] sm:$0xff]
      %v1497 = vld [vmem:[#allocation2 + $0x56] sm:$0xff]
      %v1498 = vld [vmem:[#allocation2 + $0x5e] sm:$0xff]
      %s1499 = scalar_lea.vmem %s1, 32
      %v1500 = vld [vmem:[%s1499] sm:$0xf]
      %v1502 = vsel %vm230, %v1489, 0
      %v1505 = vsel %vm230, %v1490, 0
      %v1508 = vsel %vm230, %v1491, 0
      %v1511 = vsel %vm230, %v1492, 0
      %v1514 = vsel %vm230, %v1493, 0
      %v1517 = vsel %vm230, %v1494, 0
      %v1520 = vsel %vm230, %v1495, 0
      %v1523 = vsel %vm230, %v1496, 0
      %v1526 = vsel %vm230, %v1497, 0
      %v1529 = vsel %vm230, %v1498, 0
      %v1532 = vsel %vm746, %v1500, 0
      %1534 = vmatpush.msra.mxu0 0.0
      %1535 = vmatpush.msra.mxu0 0.0
      %1536 = vmatpush.msra.mxu0 0.0
      %1537 = vmatpush.msra.mxu0 0.0
      %1538 = vmatpush.msra.mxu0 0.0
      %1539 = vmatpush.msra.mxu0 0.0
      %1540 = vmatpush.msra.mxu0 0.0
      %1541 = vmatpush.msra.mxu0 0.0
      %1542 = vmatpush.msra.mxu0 0.0
      %1543 = vmatpush.msra.mxu0 0.0
      %1544 = vmatpush.msra.mxu0 0.0
      %1545 = vmatpush.msra.mxu0 0.0
      %1546 = vmatpush.msra.mxu0 0.0
      %1547 = vmatpush.msra.mxu0 0.0
      %1548 = vmatpush.msra.mxu0 0.0
      %1549 = vmatpush.msra.mxu0 %v1532
      %1550 = vmatmul.f32.gmra.mxu0 %v1502
      %v1551 = vpop.f32.mrf.mxu0
      %v1552 = vadd.f32 0.0, %v1551
      %1553 = vmatmul.f32.gmra.mxu0 %v1505
      %v1554 = vpop.f32.mrf.mxu0
      %v1555 = vadd.f32 0.0, %v1554
      %1556 = vmatmul.f32.gmra.mxu0 %v1508
      %v1557 = vpop.f32.mrf.mxu0
      %v1558 = vadd.f32 0.0, %v1557
      %1559 = vmatmul.f32.gmra.mxu0 %v1511
      %v1560 = vpop.f32.mrf.mxu0
      %v1561 = vadd.f32 0.0, %v1560
      %1562 = vmatmul.f32.gmra.mxu0 %v1514
      %v1563 = vpop.f32.mrf.mxu0
      %v1564 = vadd.f32 0.0, %v1563
      %1565 = vmatmul.f32.gmra.mxu0 %v1517
      %v1566 = vpop.f32.mrf.mxu0
      %v1567 = vadd.f32 0.0, %v1566
      %1568 = vmatmul.f32.gmra.mxu0 %v1520
      %v1569 = vpop.f32.mrf.mxu0
      %v1570 = vadd.f32 0.0, %v1569
      %1571 = vmatmul.f32.gmra.mxu0 %v1523
      %v1572 = vpop.f32.mrf.mxu0
      %v1573 = vadd.f32 0.0, %v1572
      %1574 = vmatmul.f32.gmra.mxu0 %v1526
      %v1575 = vpop.f32.mrf.mxu0
      %v1576 = vadd.f32 0.0, %v1575
      %1577 = vmatmul.f32.gmra.mxu0 %v1529
      %v1578 = vpop.f32.mrf.mxu0
      %v1579 = vadd.f32 0.0, %v1578
      %1580 = vdwg.mxu0
      %v1581 = vadd.f32 %v1479, %v1552
      %v1582 = vadd.f32 %v1480, %v1555
      %v1583 = vadd.f32 %v1481, %v1558
      %v1584 = vadd.f32 %v1482, %v1561
      %v1585 = vadd.f32 %v1483, %v1564
      %v1586 = vadd.f32 %v1484, %v1567
      %v1587 = vadd.f32 %v1485, %v1570
      %v1588 = vadd.f32 %v1486, %v1573
      %v1589 = vadd.f32 %v1487, %v1576
      %v1590 = vadd.f32 %v1488, %v1579
      %v1591 = vld [vmem:[%s2] sm:$0x1]
      %v1593 = vperm.slane %v1591, 0
      %v1595 = vadd.f32 %v1581, %v1593
      %v1596 = vadd.f32 %v1582, %v1593
      %v1597 = vadd.f32 %v1583, %v1593
      %v1598 = vadd.f32 %v1584, %v1593
      %v1599 = vadd.f32 %v1585, %v1593
      %v1600 = vadd.f32 %v1586, %v1593
      %v1601 = vadd.f32 %v1587, %v1593
      %v1602 = vadd.f32 %v1588, %v1593
      %v1603 = vadd.f32 %v1589, %v1593
      %v1604 = vadd.f32 %v1590, %v1593
      %v1605 = vmax.f32 %v1595, 0.0
      %v1606 = vmax.f32 %v1596, 0.0
      %v1607 = vmax.f32 %v1597, 0.0
      %v1608 = vmax.f32 %v1598, 0.0
      %v1609 = vmax.f32 %v1599, 0.0
      %v1610 = vmax.f32 %v1600, 0.0
      %v1611 = vmax.f32 %v1601, 0.0
      %v1612 = vmax.f32 %v1602, 0.0
      %v1613 = vmax.f32 %v1603, 0.0
      %v1614 = vmax.f32 %v1604, 0.0
      %v1615 = vsel %vm683, 1, 0
      %v1616 = vsel %vm684, 1, 0
      %v1617 = vsel %vm685, 1, 0
      %v1618 = vsel %vm686, 1, 0
      %v1619 = vsel %vm687, 1, 0
      %v1620 = vsel %vm688, 1, 0
      %v1621 = vsel %vm689, 1, 0
      %v1622 = vsel %vm690, 1, 0
      %v1623 = vsel %vm691, 1, 0
      %v1624 = vsel %vm692, 1, 0
      %vm1625 = vcmp.eq.s32.totalorder %v1615, 1
      %vm1626 = vcmp.eq.s32.totalorder %v1616, 1
      %vm1627 = vcmp.eq.s32.totalorder %v1617, 1
      %vm1628 = vcmp.eq.s32.totalorder %v1618, 1
      %vm1629 = vcmp.eq.s32.totalorder %v1619, 1
      %vm1630 = vcmp.eq.s32.totalorder %v1620, 1
      %vm1631 = vcmp.eq.s32.totalorder %v1621, 1
      %vm1632 = vcmp.eq.s32.totalorder %v1622, 1
      %vm1633 = vcmp.eq.s32.totalorder %v1623, 1
      %vm1634 = vcmp.eq.s32.totalorder %v1624, 1
      %v1635 = vsel %vm1625, %v1605, 0.0
      %v1636 = vsel %vm1626, %v1606, 0.0
      %v1637 = vsel %vm1627, %v1607, 0.0
      %v1638 = vsel %vm1628, %v1608, 0.0
      %v1639 = vsel %vm1629, %v1609, 0.0
      %v1640 = vsel %vm1630, %v1610, 0.0
      %v1641 = vsel %vm1631, %v1611, 0.0
      %v1642 = vsel %vm1632, %v1612, 0.0
      %v1643 = vsel %vm1633, %v1613, 0.0
      %v1644 = vsel %vm1634, %v1614, 0.0
      %1645 = vst.msk [vmem:[#allocation3 + $0xb] sm:$0xff] %vm245, %v1635
      %1646 = vst.msk [vmem:[#allocation3 + $0x13] sm:$0xff] %vm245, %v1636
      %1647 = vst.msk [vmem:[#allocation3 + $0x1b] sm:$0xff] %vm245, %v1637
      %1648 = vst.msk [vmem:[#allocation3 + $0x23] sm:$0xff] %vm245, %v1638
      %1649 = vst.msk [vmem:[#allocation3 + $0x2b] sm:$0xff] %vm245, %v1639
      %1650 = vst.msk [vmem:[#allocation3 + $0x33] sm:$0xff] %vm245, %v1640
      %1651 = vst.msk [vmem:[#allocation3 + $0x3b] sm:$0xff] %vm245, %v1641
      %1652 = vst.msk [vmem:[#allocation3 + $0x43] sm:$0xff] %vm245, %v1642
      %1653 = vst.msk [vmem:[#allocation3 + $0x4b] sm:$0xff] %vm245, %v1643
      %1654 = vst.msk [vmem:[#allocation3 + $0x53] sm:$0xff] %vm245, %v1644
      %v1655 = vld [vmem:[#allocation3] sm:$0xff]
      %v1656 = vld [vmem:[#allocation3 + $0x8] sm:$0xff]
      %v1657 = vld [vmem:[#allocation3 + $0x10] sm:$0xff]
      %v1658 = vld [vmem:[#allocation3 + $0x18] sm:$0xff]
      %v1659 = vld [vmem:[#allocation3 + $0x20] sm:$0xff]
      %v1660 = vld [vmem:[#allocation3 + $0x28] sm:$0xff]
      %v1661 = vld [vmem:[#allocation3 + $0x30] sm:$0xff]
      %v1662 = vld [vmem:[#allocation3 + $0x38] sm:$0xff]
      %v1663 = vld [vmem:[#allocation3 + $0x40] sm:$0xff]
      %v1664 = vld [vmem:[#allocation3 + $0x48] sm:$0xff]
      %v1665 = vld [vmem:[%s3] sm:$0xff]
      %v1666 = vld [vmem:[#allocation3 + $0x1] sm:$0xff]
      %v1667 = vld [vmem:[#allocation3 + $0x9] sm:$0xff]
      %v1668 = vld [vmem:[#allocation3 + $0x11] sm:$0xff]
      %v1669 = vld [vmem:[#allocation3 + $0x19] sm:$0xff]
      %v1670 = vld [vmem:[#allocation3 + $0x21] sm:$0xff]
      %v1671 = vld [vmem:[#allocation3 + $0x29] sm:$0xff]
      %v1672 = vld [vmem:[#allocation3 + $0x31] sm:$0xff]
      %v1673 = vld [vmem:[#allocation3 + $0x39] sm:$0xff]
      %v1674 = vld [vmem:[#allocation3 + $0x41] sm:$0xff]
      %v1675 = vld [vmem:[#allocation3 + $0x49] sm:$0xff]
      %s1676 = scalar_lea.vmem %s3, 8
      %v1677 = vld [vmem:[%s1676] sm:$0xff]
      %v1679 = vsel %vm245, %v1666, 0
      %v1682 = vsel %vm245, %v1667, 0
      %v1685 = vsel %vm245, %v1668, 0
      %v1688 = vsel %vm245, %v1669, 0
      %v1691 = vsel %vm245, %v1670, 0
      %v1694 = vsel %vm245, %v1671, 0
      %v1697 = vsel %vm245, %v1672, 0
      %v1700 = vsel %vm245, %v1673, 0
      %v1703 = vsel %vm245, %v1674, 0
      %v1706 = vsel %vm245, %v1675, 0
      %1708 = vmatpush.msra.mxu0 0.0
      %1709 = vmatpush.msra.mxu0 0.0
      %1710 = vmatpush.msra.mxu0 0.0
      %1711 = vmatpush.msra.mxu0 0.0
      %1712 = vmatpush.msra.mxu0 0.0
      %1713 = vmatpush.msra.mxu0 0.0
      %1714 = vmatpush.msra.mxu0 0.0
      %1715 = vmatpush.msra.mxu0 0.0
      %1716 = vmatpush.msra.mxu0 0.0
      %1717 = vmatpush.msra.mxu0 0.0
      %1718 = vmatpush.msra.mxu0 0.0
      %1719 = vmatpush.msra.mxu0 0.0
      %1720 = vmatpush.msra.mxu0 0.0
      %1721 = vmatpush.msra.mxu0 0.0
      %1722 = vmatpush.msra.mxu0 0.0
      %1723 = vmatpush.msra.mxu0 %v1677
      %1724 = vmatmul.f32.gmra.mxu0 %v1679
      %v1725 = vpop.f32.mrf.mxu0
      %v1726 = vadd.f32 0.0, %v1725
      %1727 = vmatmul.f32.gmra.mxu0 %v1682
      %v1728 = vpop.f32.mrf.mxu0
      %v1729 = vadd.f32 0.0, %v1728
      %1730 = vmatmul.f32.gmra.mxu0 %v1685
      %v1731 = vpop.f32.mrf.mxu0
      %v1732 = vadd.f32 0.0, %v1731
      %1733 = vmatmul.f32.gmra.mxu0 %v1688
      %v1734 = vpop.f32.mrf.mxu0
      %v1735 = vadd.f32 0.0, %v1734
      %1736 = vmatmul.f32.gmra.mxu0 %v1691
      %v1737 = vpop.f32.mrf.mxu0
      %v1738 = vadd.f32 0.0, %v1737
      %1739 = vmatmul.f32.gmra.mxu0 %v1694
      %v1740 = vpop.f32.mrf.mxu0
      %v1741 = vadd.f32 0.0, %v1740
      %1742 = vmatmul.f32.gmra.mxu0 %v1697
      %v1743 = vpop.f32.mrf.mxu0
      %v1744 = vadd.f32 0.0, %v1743
      %1745 = vmatmul.f32.gmra.mxu0 %v1700
      %v1746 = vpop.f32.mrf.mxu0
      %v1747 = vadd.f32 0.0, %v1746
      %1748 = vmatmul.f32.gmra.mxu0 %v1703
      %v1749 = vpop.f32.mrf.mxu0
      %v1750 = vadd.f32 0.0, %v1749
      %1751 = vmatmul.f32.gmra.mxu0 %v1706
      %v1752 = vpop.f32.mrf.mxu0
      %v1753 = vadd.f32 0.0, %v1752
      %1754 = vdwg.mxu0
      %v1756 = vsel %vm245, %v1655, 0
      %v1759 = vsel %vm245, %v1656, 0
      %v1762 = vsel %vm245, %v1657, 0
      %v1765 = vsel %vm245, %v1658, 0
      %v1768 = vsel %vm245, %v1659, 0
      %v1771 = vsel %vm245, %v1660, 0
      %v1774 = vsel %vm245, %v1661, 0
      %v1777 = vsel %vm245, %v1662, 0
      %v1780 = vsel %vm245, %v1663, 0
      %v1783 = vsel %vm245, %v1664, 0
      %1785 = vmatpush.msra.mxu0 0.0
      %1786 = vmatpush.msra.mxu0 0.0
      %1787 = vmatpush.msra.mxu0 0.0
      %1788 = vmatpush.msra.mxu0 0.0
      %1789 = vmatpush.msra.mxu0 0.0
      %1790 = vmatpush.msra.mxu0 0.0
      %1791 = vmatpush.msra.mxu0 0.0
      %1792 = vmatpush.msra.mxu0 0.0
      %1793 = vmatpush.msra.mxu0 0.0
      %1794 = vmatpush.msra.mxu0 0.0
      %1795 = vmatpush.msra.mxu0 0.0
      %1796 = vmatpush.msra.mxu0 0.0
      %1797 = vmatpush.msra.mxu0 0.0
      %1798 = vmatpush.msra.mxu0 0.0
      %1799 = vmatpush.msra.mxu0 0.0
      %1800 = vmatpush.msra.mxu0 %v1665
      %1801 = vmatmul.f32.gmra.mxu0 %v1756
      %v1802 = vpop.f32.mrf.mxu0
      %v1803 = vadd.f32 %v1726, %v1802
      %1804 = vmatmul.f32.gmra.mxu0 %v1759
      %v1805 = vpop.f32.mrf.mxu0
      %v1806 = vadd.f32 %v1729, %v1805
      %1807 = vmatmul.f32.gmra.mxu0 %v1762
      %v1808 = vpop.f32.mrf.mxu0
      %v1809 = vadd.f32 %v1732, %v1808
      %1810 = vmatmul.f32.gmra.mxu0 %v1765
      %v1811 = vpop.f32.mrf.mxu0
      %v1812 = vadd.f32 %v1735, %v1811
      %1813 = vmatmul.f32.gmra.mxu0 %v1768
      %v1814 = vpop.f32.mrf.mxu0
      %v1815 = vadd.f32 %v1738, %v1814
      %1816 = vmatmul.f32.gmra.mxu0 %v1771
      %v1817 = vpop.f32.mrf.mxu0
      %v1818 = vadd.f32 %v1741, %v1817
      %1819 = vmatmul.f32.gmra.mxu0 %v1774
      %v1820 = vpop.f32.mrf.mxu0
      %v1821 = vadd.f32 %v1744, %v1820
      %1822 = vmatmul.f32.gmra.mxu0 %v1777
      %v1823 = vpop.f32.mrf.mxu0
      %v1824 = vadd.f32 %v1747, %v1823
      %1825 = vmatmul.f32.gmra.mxu0 %v1780
      %v1826 = vpop.f32.mrf.mxu0
      %v1827 = vadd.f32 %v1750, %v1826
      %1828 = vmatmul.f32.gmra.mxu0 %v1783
      %v1829 = vpop.f32.mrf.mxu0
      %v1830 = vadd.f32 %v1753, %v1829
      %1831 = vdwg.mxu0
      %v1832 = vld [vmem:[#allocation3 + $0x2] sm:$0xff]
      %v1833 = vld [vmem:[#allocation3 + $0xa] sm:$0xff]
      %v1834 = vld [vmem:[#allocation3 + $0x12] sm:$0xff]
      %v1835 = vld [vmem:[#allocation3 + $0x1a] sm:$0xff]
      %v1836 = vld [vmem:[#allocation3 + $0x22] sm:$0xff]
      %v1837 = vld [vmem:[#allocation3 + $0x2a] sm:$0xff]
      %v1838 = vld [vmem:[#allocation3 + $0x32] sm:$0xff]
      %v1839 = vld [vmem:[#allocation3 + $0x3a] sm:$0xff]
      %v1840 = vld [vmem:[#allocation3 + $0x42] sm:$0xff]
      %v1841 = vld [vmem:[#allocation3 + $0x4a] sm:$0xff]
      %s1842 = scalar_lea.vmem %s3, 16
      %v1843 = vld [vmem:[%s1842] sm:$0xff]
      %v1845 = vsel %vm245, %v1832, 0
      %v1848 = vsel %vm245, %v1833, 0
      %v1851 = vsel %vm245, %v1834, 0
      %v1854 = vsel %vm245, %v1835, 0
      %v1857 = vsel %vm245, %v1836, 0
      %v1860 = vsel %vm245, %v1837, 0
      %v1863 = vsel %vm245, %v1838, 0
      %v1866 = vsel %vm245, %v1839, 0
      %v1869 = vsel %vm245, %v1840, 0
      %v1872 = vsel %vm245, %v1841, 0
      %1874 = vmatpush.msra.mxu0 0.0
      %1875 = vmatpush.msra.mxu0 0.0
      %1876 = vmatpush.msra.mxu0 0.0
      %1877 = vmatpush.msra.mxu0 0.0
      %1878 = vmatpush.msra.mxu0 0.0
      %1879 = vmatpush.msra.mxu0 0.0
      %1880 = vmatpush.msra.mxu0 0.0
      %1881 = vmatpush.msra.mxu0 0.0
      %1882 = vmatpush.msra.mxu0 0.0
      %1883 = vmatpush.msra.mxu0 0.0
      %1884 = vmatpush.msra.mxu0 0.0
      %1885 = vmatpush.msra.mxu0 0.0
      %1886 = vmatpush.msra.mxu0 0.0
      %1887 = vmatpush.msra.mxu0 0.0
      %1888 = vmatpush.msra.mxu0 0.0
      %1889 = vmatpush.msra.mxu0 %v1843
      %1890 = vmatmul.f32.gmra.mxu0 %v1845
      %v1891 = vpop.f32.mrf.mxu0
      %v1892 = vadd.f32 0.0, %v1891
      %1893 = vmatmul.f32.gmra.mxu0 %v1848
      %v1894 = vpop.f32.mrf.mxu0
      %v1895 = vadd.f32 0.0, %v1894
      %1896 = vmatmul.f32.gmra.mxu0 %v1851
      %v1897 = vpop.f32.mrf.mxu0
      %v1898 = vadd.f32 0.0, %v1897
      %1899 = vmatmul.f32.gmra.mxu0 %v1854
      %v1900 = vpop.f32.mrf.mxu0
      %v1901 = vadd.f32 0.0, %v1900
      %1902 = vmatmul.f32.gmra.mxu0 %v1857
      %v1903 = vpop.f32.mrf.mxu0
      %v1904 = vadd.f32 0.0, %v1903
      %1905 = vmatmul.f32.gmra.mxu0 %v1860
      %v1906 = vpop.f32.mrf.mxu0
      %v1907 = vadd.f32 0.0, %v1906
      %1908 = vmatmul.f32.gmra.mxu0 %v1863
      %v1909 = vpop.f32.mrf.mxu0
      %v1910 = vadd.f32 0.0, %v1909
      %1911 = vmatmul.f32.gmra.mxu0 %v1866
      %v1912 = vpop.f32.mrf.mxu0
      %v1913 = vadd.f32 0.0, %v1912
      %1914 = vmatmul.f32.gmra.mxu0 %v1869
      %v1915 = vpop.f32.mrf.mxu0
      %v1916 = vadd.f32 0.0, %v1915
      %1917 = vmatmul.f32.gmra.mxu0 %v1872
      %v1918 = vpop.f32.mrf.mxu0
      %v1919 = vadd.f32 0.0, %v1918
      %1920 = vdwg.mxu0
      %v1921 = vadd.f32 %v1803, %v1892
      %v1922 = vadd.f32 %v1806, %v1895
      %v1923 = vadd.f32 %v1809, %v1898
      %v1924 = vadd.f32 %v1812, %v1901
      %v1925 = vadd.f32 %v1815, %v1904
      %v1926 = vadd.f32 %v1818, %v1907
      %v1927 = vadd.f32 %v1821, %v1910
      %v1928 = vadd.f32 %v1824, %v1913
      %v1929 = vadd.f32 %v1827, %v1916
      %v1930 = vadd.f32 %v1830, %v1919
      %v1931 = vld [vmem:[#allocation3 + $0xa] sm:$0xff]
      %v1932 = vld [vmem:[#allocation3 + $0x12] sm:$0xff]
      %v1933 = vld [vmem:[#allocation3 + $0x1a] sm:$0xff]
      %v1934 = vld [vmem:[#allocation3 + $0x22] sm:$0xff]
      %v1935 = vld [vmem:[#allocation3 + $0x2a] sm:$0xff]
      %v1936 = vld [vmem:[#allocation3 + $0x32] sm:$0xff]
      %v1937 = vld [vmem:[#allocation3 + $0x3a] sm:$0xff]
      %v1938 = vld [vmem:[#allocation3 + $0x42] sm:$0xff]
      %v1939 = vld [vmem:[#allocation3 + $0x4a] sm:$0xff]
      %v1940 = vld [vmem:[#allocation3 + $0x52] sm:$0xff]
      %s1941 = scalar_lea.vmem %s3, 24
      %v1942 = vld [vmem:[%s1941] sm:$0xff]
      %v1944 = vsel %vm245, %v1931, 0
      %v1947 = vsel %vm245, %v1932, 0
      %v1950 = vsel %vm245, %v1933, 0
      %v1953 = vsel %vm245, %v1934, 0
      %v1956 = vsel %vm245, %v1935, 0
      %v1959 = vsel %vm245, %v1936, 0
      %v1962 = vsel %vm245, %v1937, 0
      %v1965 = vsel %vm245, %v1938, 0
      %v1968 = vsel %vm245, %v1939, 0
      %v1971 = vsel %vm245, %v1940, 0
      %1973 = vmatpush.msra.mxu0 0.0
      %1974 = vmatpush.msra.mxu0 0.0
      %1975 = vmatpush.msra.mxu0 0.0
      %1976 = vmatpush.msra.mxu0 0.0
      %1977 = vmatpush.msra.mxu0 0.0
      %1978 = vmatpush.msra.mxu0 0.0
      %1979 = vmatpush.msra.mxu0 0.0
      %1980 = vmatpush.msra.mxu0 0.0
      %1981 = vmatpush.msra.mxu0 0.0
      %1982 = vmatpush.msra.mxu0 0.0
      %1983 = vmatpush.msra.mxu0 0.0
      %1984 = vmatpush.msra.mxu0 0.0
      %1985 = vmatpush.msra.mxu0 0.0
      %1986 = vmatpush.msra.mxu0 0.0
      %1987 = vmatpush.msra.mxu0 0.0
      %1988 = vmatpush.msra.mxu0 %v1942
      %1989 = vmatmul.f32.gmra.mxu0 %v1944
      %v1990 = vpop.f32.mrf.mxu0
      %v1991 = vadd.f32 0.0, %v1990
      %1992 = vmatmul.f32.gmra.mxu0 %v1947
      %v1993 = vpop.f32.mrf.mxu0
      %v1994 = vadd.f32 0.0, %v1993
      %1995 = vmatmul.f32.gmra.mxu0 %v1950
      %v1996 = vpop.f32.mrf.mxu0
      %v1997 = vadd.f32 0.0, %v1996
      %1998 = vmatmul.f32.gmra.mxu0 %v1953
      %v1999 = vpop.f32.mrf.mxu0
      %v2000 = vadd.f32 0.0, %v1999
      %2001 = vmatmul.f32.gmra.mxu0 %v1956
      %v2002 = vpop.f32.mrf.mxu0
      %v2003 = vadd.f32 0.0, %v2002
      %2004 = vmatmul.f32.gmra.mxu0 %v1959
      %v2005 = vpop.f32.mrf.mxu0
      %v2006 = vadd.f32 0.0, %v2005
      %2007 = vmatmul.f32.gmra.mxu0 %v1962
      %v2008 = vpop.f32.mrf.mxu0
      %v2009 = vadd.f32 0.0, %v2008
      %2010 = vmatmul.f32.gmra.mxu0 %v1965
      %v2011 = vpop.f32.mrf.mxu0
      %v2012 = vadd.f32 0.0, %v2011
      %2013 = vmatmul.f32.gmra.mxu0 %v1968
      %v2014 = vpop.f32.mrf.mxu0
      %v2015 = vadd.f32 0.0, %v2014
      %2016 = vmatmul.f32.gmra.mxu0 %v1971
      %v2017 = vpop.f32.mrf.mxu0
      %v2018 = vadd.f32 0.0, %v2017
      %2019 = vdwg.mxu0
      %v2020 = vadd.f32 %v1921, %v1991
      %v2021 = vadd.f32 %v1922, %v1994
      %v2022 = vadd.f32 %v1923, %v1997
      %v2023 = vadd.f32 %v1924, %v2000
      %v2024 = vadd.f32 %v1925, %v2003
      %v2025 = vadd.f32 %v1926, %v2006
      %v2026 = vadd.f32 %v1927, %v2009
      %v2027 = vadd.f32 %v1928, %v2012
      %v2028 = vadd.f32 %v1929, %v2015
      %v2029 = vadd.f32 %v1930, %v2018
      %v2030 = vld [vmem:[#allocation3 + $0xb] sm:$0xff]
      %v2031 = vld [vmem:[#allocation3 + $0x13] sm:$0xff]
      %v2032 = vld [vmem:[#allocation3 + $0x1b] sm:$0xff]
      %v2033 = vld [vmem:[#allocation3 + $0x23] sm:$0xff]
      %v2034 = vld [vmem:[#allocation3 + $0x2b] sm:$0xff]
      %v2035 = vld [vmem:[#allocation3 + $0x33] sm:$0xff]
      %v2036 = vld [vmem:[#allocation3 + $0x3b] sm:$0xff]
      %v2037 = vld [vmem:[#allocation3 + $0x43] sm:$0xff]
      %v2038 = vld [vmem:[#allocation3 + $0x4b] sm:$0xff]
      %v2039 = vld [vmem:[#allocation3 + $0x53] sm:$0xff]
      %s2040 = scalar_lea.vmem %s3, 32
      %v2041 = vld [vmem:[%s2040] sm:$0xff]
      %v2043 = vsel %vm245, %v2030, 0
      %v2046 = vsel %vm245, %v2031, 0
      %v2049 = vsel %vm245, %v2032, 0
      %v2052 = vsel %vm245, %v2033, 0
      %v2055 = vsel %vm245, %v2034, 0
      %v2058 = vsel %vm245, %v2035, 0
      %v2061 = vsel %vm245, %v2036, 0
      %v2064 = vsel %vm245, %v2037, 0
      %v2067 = vsel %vm245, %v2038, 0
      %v2070 = vsel %vm245, %v2039, 0
      %2072 = vmatpush.msra.mxu0 0.0
      %2073 = vmatpush.msra.mxu0 0.0
      %2074 = vmatpush.msra.mxu0 0.0
      %2075 = vmatpush.msra.mxu0 0.0
      %2076 = vmatpush.msra.mxu0 0.0
      %2077 = vmatpush.msra.mxu0 0.0
      %2078 = vmatpush.msra.mxu0 0.0
      %2079 = vmatpush.msra.mxu0 0.0
      %2080 = vmatpush.msra.mxu0 0.0
      %2081 = vmatpush.msra.mxu0 0.0
      %2082 = vmatpush.msra.mxu0 0.0
      %2083 = vmatpush.msra.mxu0 0.0
      %2084 = vmatpush.msra.mxu0 0.0
      %2085 = vmatpush.msra.mxu0 0.0
      %2086 = vmatpush.msra.mxu0 0.0
      %2087 = vmatpush.msra.mxu0 %v2041
      %2088 = vmatmul.f32.gmra.mxu0 %v2043
      %v2089 = vpop.f32.mrf.mxu0
      %v2090 = vadd.f32 0.0, %v2089
      %2091 = vmatmul.f32.gmra.mxu0 %v2046
      %v2092 = vpop.f32.mrf.mxu0
      %v2093 = vadd.f32 0.0, %v2092
      %2094 = vmatmul.f32.gmra.mxu0 %v2049
      %v2095 = vpop.f32.mrf.mxu0
      %v2096 = vadd.f32 0.0, %v2095
      %2097 = vmatmul.f32.gmra.mxu0 %v2052
      %v2098 = vpop.f32.mrf.mxu0
      %v2099 = vadd.f32 0.0, %v2098
      %2100 = vmatmul.f32.gmra.mxu0 %v2055
      %v2101 = vpop.f32.mrf.mxu0
      %v2102 = vadd.f32 0.0, %v2101
      %2103 = vmatmul.f32.gmra.mxu0 %v2058
      %v2104 = vpop.f32.mrf.mxu0
      %v2105 = vadd.f32 0.0, %v2104
      %2106 = vmatmul.f32.gmra.mxu0 %v2061
      %v2107 = vpop.f32.mrf.mxu0
      %v2108 = vadd.f32 0.0, %v2107
      %2109 = vmatmul.f32.gmra.mxu0 %v2064
      %v2110 = vpop.f32.mrf.mxu0
      %v2111 = vadd.f32 0.0, %v2110
      %2112 = vmatmul.f32.gmra.mxu0 %v2067
      %v2113 = vpop.f32.mrf.mxu0
      %v2114 = vadd.f32 0.0, %v2113
      %2115 = vmatmul.f32.gmra.mxu0 %v2070
      %v2116 = vpop.f32.mrf.mxu0
      %v2117 = vadd.f32 0.0, %v2116
      %2118 = vdwg.mxu0
      %v2119 = vadd.f32 %v2020, %v2090
      %v2120 = vadd.f32 %v2021, %v2093
      %v2121 = vadd.f32 %v2022, %v2096
      %v2122 = vadd.f32 %v2023, %v2099
      %v2123 = vadd.f32 %v2024, %v2102
      %v2124 = vadd.f32 %v2025, %v2105
      %v2125 = vadd.f32 %v2026, %v2108
      %v2126 = vadd.f32 %v2027, %v2111
      %v2127 = vadd.f32 %v2028, %v2114
      %v2128 = vadd.f32 %v2029, %v2117
      %v2129 = vld [vmem:[#allocation3 + $0xc] sm:$0xff]
      %v2130 = vld [vmem:[#allocation3 + $0x14] sm:$0xff]
      %v2131 = vld [vmem:[#allocation3 + $0x1c] sm:$0xff]
      %v2132 = vld [vmem:[#allocation3 + $0x24] sm:$0xff]
      %v2133 = vld [vmem:[#allocation3 + $0x2c] sm:$0xff]
      %v2134 = vld [vmem:[#allocation3 + $0x34] sm:$0xff]
      %v2135 = vld [vmem:[#allocation3 + $0x3c] sm:$0xff]
      %v2136 = vld [vmem:[#allocation3 + $0x44] sm:$0xff]
      %v2137 = vld [vmem:[#allocation3 + $0x4c] sm:$0xff]
      %v2138 = vld [vmem:[#allocation3 + $0x54] sm:$0xff]
      %s2139 = scalar_lea.vmem %s3, 40
      %v2140 = vld [vmem:[%s2139] sm:$0xff]
      %v2142 = vsel %vm245, %v2129, 0
      %v2145 = vsel %vm245, %v2130, 0
      %v2148 = vsel %vm245, %v2131, 0
      %v2151 = vsel %vm245, %v2132, 0
      %v2154 = vsel %vm245, %v2133, 0
      %v2157 = vsel %vm245, %v2134, 0
      %v2160 = vsel %vm245, %v2135, 0
      %v2163 = vsel %vm245, %v2136, 0
      %v2166 = vsel %vm245, %v2137, 0
      %v2169 = vsel %vm245, %v2138, 0
      %2171 = vmatpush.msra.mxu0 0.0
      %2172 = vmatpush.msra.mxu0 0.0
      %2173 = vmatpush.msra.mxu0 0.0
      %2174 = vmatpush.msra.mxu0 0.0
      %2175 = vmatpush.msra.mxu0 0.0
      %2176 = vmatpush.msra.mxu0 0.0
      %2177 = vmatpush.msra.mxu0 0.0
      %2178 = vmatpush.msra.mxu0 0.0
      %2179 = vmatpush.msra.mxu0 0.0
      %2180 = vmatpush.msra.mxu0 0.0
      %2181 = vmatpush.msra.mxu0 0.0
      %2182 = vmatpush.msra.mxu0 0.0
      %2183 = vmatpush.msra.mxu0 0.0
      %2184 = vmatpush.msra.mxu0 0.0
      %2185 = vmatpush.msra.mxu0 0.0
      %2186 = vmatpush.msra.mxu0 %v2140
      %2187 = vmatmul.f32.gmra.mxu0 %v2142
      %v2188 = vpop.f32.mrf.mxu0
      %v2189 = vadd.f32 0.0, %v2188
      %2190 = vmatmul.f32.gmra.mxu0 %v2145
      %v2191 = vpop.f32.mrf.mxu0
      %v2192 = vadd.f32 0.0, %v2191
      %2193 = vmatmul.f32.gmra.mxu0 %v2148
      %v2194 = vpop.f32.mrf.mxu0
      %v2195 = vadd.f32 0.0, %v2194
      %2196 = vmatmul.f32.gmra.mxu0 %v2151
      %v2197 = vpop.f32.mrf.mxu0
      %v2198 = vadd.f32 0.0, %v2197
      %2199 = vmatmul.f32.gmra.mxu0 %v2154
      %v2200 = vpop.f32.mrf.mxu0
      %v2201 = vadd.f32 0.0, %v2200
      %2202 = vmatmul.f32.gmra.mxu0 %v2157
      %v2203 = vpop.f32.mrf.mxu0
      %v2204 = vadd.f32 0.0, %v2203
      %2205 = vmatmul.f32.gmra.mxu0 %v2160
      %v2206 = vpop.f32.mrf.mxu0
      %v2207 = vadd.f32 0.0, %v2206
      %2208 = vmatmul.f32.gmra.mxu0 %v2163
      %v2209 = vpop.f32.mrf.mxu0
      %v2210 = vadd.f32 0.0, %v2209
      %2211 = vmatmul.f32.gmra.mxu0 %v2166
      %v2212 = vpop.f32.mrf.mxu0
      %v2213 = vadd.f32 0.0, %v2212
      %2214 = vmatmul.f32.gmra.mxu0 %v2169
      %v2215 = vpop.f32.mrf.mxu0
      %v2216 = vadd.f32 0.0, %v2215
      %2217 = vdwg.mxu0
      %v2218 = vadd.f32 %v2119, %v2189
      %v2219 = vadd.f32 %v2120, %v2192
      %v2220 = vadd.f32 %v2121, %v2195
      %v2221 = vadd.f32 %v2122, %v2198
      %v2222 = vadd.f32 %v2123, %v2201
      %v2223 = vadd.f32 %v2124, %v2204
      %v2224 = vadd.f32 %v2125, %v2207
      %v2225 = vadd.f32 %v2126, %v2210
      %v2226 = vadd.f32 %v2127, %v2213
      %v2227 = vadd.f32 %v2128, %v2216
      %v2228 = vld [vmem:[#allocation3 + $0x14] sm:$0xff]
      %v2229 = vld [vmem:[#allocation3 + $0x1c] sm:$0xff]
      %v2230 = vld [vmem:[#allocation3 + $0x24] sm:$0xff]
      %v2231 = vld [vmem:[#allocation3 + $0x2c] sm:$0xff]
      %v2232 = vld [vmem:[#allocation3 + $0x34] sm:$0xff]
      %v2233 = vld [vmem:[#allocation3 + $0x3c] sm:$0xff]
      %v2234 = vld [vmem:[#allocation3 + $0x44] sm:$0xff]
      %v2235 = vld [vmem:[#allocation3 + $0x4c] sm:$0xff]
      %v2236 = vld [vmem:[#allocation3 + $0x54] sm:$0xff]
      %v2237 = vld [vmem:[#allocation3 + $0x5c] sm:$0xff]
      %s2238 = scalar_lea.vmem %s3, 48
      %v2239 = vld [vmem:[%s2238] sm:$0xff]
      %v2241 = vsel %vm245, %v2228, 0
      %v2244 = vsel %vm245, %v2229, 0
      %v2247 = vsel %vm245, %v2230, 0
      %v2250 = vsel %vm245, %v2231, 0
      %v2253 = vsel %vm245, %v2232, 0
      %v2256 = vsel %vm245, %v2233, 0
      %v2259 = vsel %vm245, %v2234, 0
      %v2262 = vsel %vm245, %v2235, 0
      %v2265 = vsel %vm245, %v2236, 0
      %v2268 = vsel %vm245, %v2237, 0
      %2270 = vmatpush.msra.mxu0 0.0
      %2271 = vmatpush.msra.mxu0 0.0
      %2272 = vmatpush.msra.mxu0 0.0
      %2273 = vmatpush.msra.mxu0 0.0
      %2274 = vmatpush.msra.mxu0 0.0
      %2275 = vmatpush.msra.mxu0 0.0
      %2276 = vmatpush.msra.mxu0 0.0
      %2277 = vmatpush.msra.mxu0 0.0
      %2278 = vmatpush.msra.mxu0 0.0
      %2279 = vmatpush.msra.mxu0 0.0
      %2280 = vmatpush.msra.mxu0 0.0
      %2281 = vmatpush.msra.mxu0 0.0
      %2282 = vmatpush.msra.mxu0 0.0
      %2283 = vmatpush.msra.mxu0 0.0
      %2284 = vmatpush.msra.mxu0 0.0
      %2285 = vmatpush.msra.mxu0 %v2239
      %2286 = vmatmul.f32.gmra.mxu0 %v2241
      %v2287 = vpop.f32.mrf.mxu0
      %v2288 = vadd.f32 0.0, %v2287
      %2289 = vmatmul.f32.gmra.mxu0 %v2244
      %v2290 = vpop.f32.mrf.mxu0
      %v2291 = vadd.f32 0.0, %v2290
      %2292 = vmatmul.f32.gmra.mxu0 %v2247
      %v2293 = vpop.f32.mrf.mxu0
      %v2294 = vadd.f32 0.0, %v2293
      %2295 = vmatmul.f32.gmra.mxu0 %v2250
      %v2296 = vpop.f32.mrf.mxu0
      %v2297 = vadd.f32 0.0, %v2296
      %2298 = vmatmul.f32.gmra.mxu0 %v2253
      %v2299 = vpop.f32.mrf.mxu0
      %v2300 = vadd.f32 0.0, %v2299
      %2301 = vmatmul.f32.gmra.mxu0 %v2256
      %v2302 = vpop.f32.mrf.mxu0
      %v2303 = vadd.f32 0.0, %v2302
      %2304 = vmatmul.f32.gmra.mxu0 %v2259
      %v2305 = vpop.f32.mrf.mxu0
      %v2306 = vadd.f32 0.0, %v2305
      %2307 = vmatmul.f32.gmra.mxu0 %v2262
      %v2308 = vpop.f32.mrf.mxu0
      %v2309 = vadd.f32 0.0, %v2308
      %2310 = vmatmul.f32.gmra.mxu0 %v2265
      %v2311 = vpop.f32.mrf.mxu0
      %v2312 = vadd.f32 0.0, %v2311
      %2313 = vmatmul.f32.gmra.mxu0 %v2268
      %v2314 = vpop.f32.mrf.mxu0
      %v2315 = vadd.f32 0.0, %v2314
      %2316 = vdwg.mxu0
      %v2317 = vadd.f32 %v2218, %v2288
      %v2318 = vadd.f32 %v2219, %v2291
      %v2319 = vadd.f32 %v2220, %v2294
      %v2320 = vadd.f32 %v2221, %v2297
      %v2321 = vadd.f32 %v2222, %v2300
      %v2322 = vadd.f32 %v2223, %v2303
      %v2323 = vadd.f32 %v2224, %v2306
      %v2324 = vadd.f32 %v2225, %v2309
      %v2325 = vadd.f32 %v2226, %v2312
      %v2326 = vadd.f32 %v2227, %v2315
      %v2327 = vld [vmem:[#allocation3 + $0x15] sm:$0xff]
      %v2328 = vld [vmem:[#allocation3 + $0x1d] sm:$0xff]
      %v2329 = vld [vmem:[#allocation3 + $0x25] sm:$0xff]
      %v2330 = vld [vmem:[#allocation3 + $0x2d] sm:$0xff]
      %v2331 = vld [vmem:[#allocation3 + $0x35] sm:$0xff]
      %v2332 = vld [vmem:[#allocation3 + $0x3d] sm:$0xff]
      %v2333 = vld [vmem:[#allocation3 + $0x45] sm:$0xff]
      %v2334 = vld [vmem:[#allocation3 + $0x4d] sm:$0xff]
      %v2335 = vld [vmem:[#allocation3 + $0x55] sm:$0xff]
      %v2336 = vld [vmem:[#allocation3 + $0x5d] sm:$0xff]
      %s2337 = scalar_lea.vmem %s3, 56
      %v2338 = vld [vmem:[%s2337] sm:$0xff]
      %v2340 = vsel %vm245, %v2327, 0
      %v2343 = vsel %vm245, %v2328, 0
      %v2346 = vsel %vm245, %v2329, 0
      %v2349 = vsel %vm245, %v2330, 0
      %v2352 = vsel %vm245, %v2331, 0
      %v2355 = vsel %vm245, %v2332, 0
      %v2358 = vsel %vm245, %v2333, 0
      %v2361 = vsel %vm245, %v2334, 0
      %v2364 = vsel %vm245, %v2335, 0
      %v2367 = vsel %vm245, %v2336, 0
      %2369 = vmatpush.msra.mxu0 0.0
      %2370 = vmatpush.msra.mxu0 0.0
      %2371 = vmatpush.msra.mxu0 0.0
      %2372 = vmatpush.msra.mxu0 0.0
      %2373 = vmatpush.msra.mxu0 0.0
      %2374 = vmatpush.msra.mxu0 0.0
      %2375 = vmatpush.msra.mxu0 0.0
      %2376 = vmatpush.msra.mxu0 0.0
      %2377 = vmatpush.msra.mxu0 0.0
      %2378 = vmatpush.msra.mxu0 0.0
      %2379 = vmatpush.msra.mxu0 0.0
      %2380 = vmatpush.msra.mxu0 0.0
      %2381 = vmatpush.msra.mxu0 0.0
      %2382 = vmatpush.msra.mxu0 0.0
      %2383 = vmatpush.msra.mxu0 0.0
      %2384 = vmatpush.msra.mxu0 %v2338
      %2385 = vmatmul.f32.gmra.mxu0 %v2340
      %v2386 = vpop.f32.mrf.mxu0
      %v2387 = vadd.f32 0.0, %v2386
      %2388 = vmatmul.f32.gmra.mxu0 %v2343
      %v2389 = vpop.f32.mrf.mxu0
      %v2390 = vadd.f32 0.0, %v2389
      %2391 = vmatmul.f32.gmra.mxu0 %v2346
      %v2392 = vpop.f32.mrf.mxu0
      %v2393 = vadd.f32 0.0, %v2392
      %2394 = vmatmul.f32.gmra.mxu0 %v2349
      %v2395 = vpop.f32.mrf.mxu0
      %v2396 = vadd.f32 0.0, %v2395
      %2397 = vmatmul.f32.gmra.mxu0 %v2352
      %v2398 = vpop.f32.mrf.mxu0
      %v2399 = vadd.f32 0.0, %v2398
      %2400 = vmatmul.f32.gmra.mxu0 %v2355
      %v2401 = vpop.f32.mrf.mxu0
      %v2402 = vadd.f32 0.0, %v2401
      %2403 = vmatmul.f32.gmra.mxu0 %v2358
      %v2404 = vpop.f32.mrf.mxu0
      %v2405 = vadd.f32 0.0, %v2404
      %2406 = vmatmul.f32.gmra.mxu0 %v2361
      %v2407 = vpop.f32.mrf.mxu0
      %v2408 = vadd.f32 0.0, %v2407
      %2409 = vmatmul.f32.gmra.mxu0 %v2364
      %v2410 = vpop.f32.mrf.mxu0
      %v2411 = vadd.f32 0.0, %v2410
      %2412 = vmatmul.f32.gmra.mxu0 %v2367
      %v2413 = vpop.f32.mrf.mxu0
      %v2414 = vadd.f32 0.0, %v2413
      %2415 = vdwg.mxu0
      %v2416 = vadd.f32 %v2317, %v2387
      %v2417 = vadd.f32 %v2318, %v2390
      %v2418 = vadd.f32 %v2319, %v2393
      %v2419 = vadd.f32 %v2320, %v2396
      %v2420 = vadd.f32 %v2321, %v2399
      %v2421 = vadd.f32 %v2322, %v2402
      %v2422 = vadd.f32 %v2323, %v2405
      %v2423 = vadd.f32 %v2324, %v2408
      %v2424 = vadd.f32 %v2325, %v2411
      %v2425 = vadd.f32 %v2326, %v2414
      %v2426 = vld [vmem:[#allocation3 + $0x16] sm:$0xff]
      %v2427 = vld [vmem:[#allocation3 + $0x1e] sm:$0xff]
      %v2428 = vld [vmem:[#allocation3 + $0x26] sm:$0xff]
      %v2429 = vld [vmem:[#allocation3 + $0x2e] sm:$0xff]
      %v2430 = vld [vmem:[#allocation3 + $0x36] sm:$0xff]
      %v2431 = vld [vmem:[#allocation3 + $0x3e] sm:$0xff]
      %v2432 = vld [vmem:[#allocation3 + $0x46] sm:$0xff]
      %v2433 = vld [vmem:[#allocation3 + $0x4e] sm:$0xff]
      %v2434 = vld [vmem:[#allocation3 + $0x56] sm:$0xff]
      %v2435 = vld [vmem:[#allocation3 + $0x5e] sm:$0xff]
      %s2436 = scalar_lea.vmem %s3, 64
      %v2437 = vld [vmem:[%s2436] sm:$0xff]
      %v2439 = vsel %vm245, %v2426, 0
      %v2442 = vsel %vm245, %v2427, 0
      %v2445 = vsel %vm245, %v2428, 0
      %v2448 = vsel %vm245, %v2429, 0
      %v2451 = vsel %vm245, %v2430, 0
      %v2454 = vsel %vm245, %v2431, 0
      %v2457 = vsel %vm245, %v2432, 0
      %v2460 = vsel %vm245, %v2433, 0
      %v2463 = vsel %vm245, %v2434, 0
      %v2466 = vsel %vm245, %v2435, 0
      %2468 = vmatpush.msra.mxu0 0.0
      %2469 = vmatpush.msra.mxu0 0.0
      %2470 = vmatpush.msra.mxu0 0.0
      %2471 = vmatpush.msra.mxu0 0.0
      %2472 = vmatpush.msra.mxu0 0.0
      %2473 = vmatpush.msra.mxu0 0.0
      %2474 = vmatpush.msra.mxu0 0.0
      %2475 = vmatpush.msra.mxu0 0.0
      %2476 = vmatpush.msra.mxu0 0.0
      %2477 = vmatpush.msra.mxu0 0.0
      %2478 = vmatpush.msra.mxu0 0.0
      %2479 = vmatpush.msra.mxu0 0.0
      %2480 = vmatpush.msra.mxu0 0.0
      %2481 = vmatpush.msra.mxu0 0.0
      %2482 = vmatpush.msra.mxu0 0.0
      %2483 = vmatpush.msra.mxu0 %v2437
      %2484 = vmatmul.f32.gmra.mxu0 %v2439
      %v2485 = vpop.f32.mrf.mxu0
      %v2486 = vadd.f32 0.0, %v2485
      %2487 = vmatmul.f32.gmra.mxu0 %v2442
      %v2488 = vpop.f32.mrf.mxu0
      %v2489 = vadd.f32 0.0, %v2488
      %2490 = vmatmul.f32.gmra.mxu0 %v2445
      %v2491 = vpop.f32.mrf.mxu0
      %v2492 = vadd.f32 0.0, %v2491
      %2493 = vmatmul.f32.gmra.mxu0 %v2448
      %v2494 = vpop.f32.mrf.mxu0
      %v2495 = vadd.f32 0.0, %v2494
      %2496 = vmatmul.f32.gmra.mxu0 %v2451
      %v2497 = vpop.f32.mrf.mxu0
      %v2498 = vadd.f32 0.0, %v2497
      %2499 = vmatmul.f32.gmra.mxu0 %v2454
      %v2500 = vpop.f32.mrf.mxu0
      %v2501 = vadd.f32 0.0, %v2500
      %2502 = vmatmul.f32.gmra.mxu0 %v2457
      %v2503 = vpop.f32.mrf.mxu0
      %v2504 = vadd.f32 0.0, %v2503
      %2505 = vmatmul.f32.gmra.mxu0 %v2460
      %v2506 = vpop.f32.mrf.mxu0
      %v2507 = vadd.f32 0.0, %v2506
      %2508 = vmatmul.f32.gmra.mxu0 %v2463
      %v2509 = vpop.f32.mrf.mxu0
      %v2510 = vadd.f32 0.0, %v2509
      %2511 = vmatmul.f32.gmra.mxu0 %v2466
      %v2512 = vpop.f32.mrf.mxu0
      %v2513 = vadd.f32 0.0, %v2512
      %2514 = vdwg.mxu0
      %v2515 = vadd.f32 %v2416, %v2486
      %v2516 = vadd.f32 %v2417, %v2489
      %v2517 = vadd.f32 %v2418, %v2492
      %v2518 = vadd.f32 %v2419, %v2495
      %v2519 = vadd.f32 %v2420, %v2498
      %v2520 = vadd.f32 %v2421, %v2501
      %v2521 = vadd.f32 %v2422, %v2504
      %v2522 = vadd.f32 %v2423, %v2507
      %v2523 = vadd.f32 %v2424, %v2510
      %v2524 = vadd.f32 %v2425, %v2513
      %v2525 = vld [vmem:[%s4] sm:$0x1]
      %v2527 = vperm.slane %v2525, 0
      %v2529 = vadd.f32 %v2515, %v2527
      %v2530 = vadd.f32 %v2516, %v2527
      %v2531 = vadd.f32 %v2517, %v2527
      %v2532 = vadd.f32 %v2518, %v2527
      %v2533 = vadd.f32 %v2519, %v2527
      %v2534 = vadd.f32 %v2520, %v2527
      %v2535 = vadd.f32 %v2521, %v2527
      %v2536 = vadd.f32 %v2522, %v2527
      %v2537 = vadd.f32 %v2523, %v2527
      %v2538 = vadd.f32 %v2524, %v2527
      %v2539 = vmax.f32 %v2529, 0.0
      %v2540 = vmax.f32 %v2530, 0.0
      %v2541 = vmax.f32 %v2531, 0.0
      %v2542 = vmax.f32 %v2532, 0.0
      %v2543 = vmax.f32 %v2533, 0.0
      %v2544 = vmax.f32 %v2534, 0.0
      %v2545 = vmax.f32 %v2535, 0.0
      %v2546 = vmax.f32 %v2536, 0.0
      %v2547 = vmax.f32 %v2537, 0.0
      %v2548 = vmax.f32 %v2538, 0.0
      %2549 = vst.msk [vmem:[%s229] sm:$0xff] %vm245, %v2539
      %s2550 = scalar_lea.vmem %s229, 8
      %vm2551 = vcmask 64514
      %2552 = vst.msk [vmem:[%s2550 - $0x2] sm:$0xfc] %vm2551, %v2540
      %vm2553 = vcmask 58368
      %2554 = vst.msk [vmem:[%s2550 + $0x6] sm:$0x3] %vm2553, %v2541
      %s2555 = scalar_lea.vmem %s229, 16
      %vm2556 = vcmask 64516
      %2557 = vst.msk [vmem:[%s2555 - $0x4] sm:$0xf0] %vm2556, %v2541
      %vm2558 = vcmask 60416
      %2559 = vst.msk [vmem:[%s2555 + $0x4] sm:$0xf] %vm2558, %v2542
      %s2560 = scalar_lea.vmem %s229, 24
      %vm2561 = vcmask 64518
      %2562 = vst.msk [vmem:[%s2560 - $0x6] sm:$0xc0] %vm2561, %v2542
      %2563 = vst.msk [vmem:[%s2560 + $0x2] sm:$0x3f] %vm258, %v2543
      %s2564 = scalar_lea.vmem %s229, 32
      %2565 = vst.msk [vmem:[%s2564] sm:$0xff] %vm245, %v2544
      %s2566 = scalar_lea.vmem %s229, 40
      %2567 = vst.msk [vmem:[%s2566 - $0x2] sm:$0xfc] %vm2551, %v2545
      %2568 = vst.msk [vmem:[%s2566 + $0x6] sm:$0x3] %vm2553, %v2546
      %s2569 = scalar_lea.vmem %s229, 48
      %2570 = vst.msk [vmem:[%s2569 - $0x4] sm:$0xf0] %vm2556, %v2546
      %2571 = vst.msk [vmem:[%s2569 + $0x4] sm:$0xf] %vm2558, %v2547
      %s2572 = scalar_lea.vmem %s229, 56
      %2573 = vst.msk [vmem:[%s2572 - $0x6] sm:$0xc0] %vm2561, %v2547
      %2574 = vst.msk [vmem:[%s2572 + $0x2] sm:$0x3f] %vm258, %v2548
      %p2575 = scmp.lt.s32.totalorder %s16, 1
      %s2576 = scalar_select %p2575, %s16, 1
      %s2577 = smul.addr %s2576, 8
      %s2578 = smul.addr %s2577, 8
      %s2579 = scalar_lea.vmem %s5, %s2578
      // Predicated region
      $region41: #{down_forward.1} parent=39 // pred_check
        %p2580 = pneg %p144
      $region42: #{down_forward.1} parent=39 // pred_check_branch
        %2582 = sbr.rel (%p2580) target = $region44
      $region43: #{down_forward.1} parent=39 // pred_region
        _
      $region44: #{down_forward.1} parent=39 // pred_fallthru
        _
    $region40: #{down_forward.1} parent=5 // pred_fallthru
      _
    %p2583 = scmp.le.s32.totalorder 2, %s11
    // Predicated region
    $region45: #{down_forward.1} parent=5 // pred_check
      %p2584 = pneg %p2583
    $region46: #{down_forward.1} parent=5 // pred_check_branch
      %2586 = sbr.rel (%p2584) target = $region48
    $region47: #{down_forward.1} parent=5 // pred_region
      %s2587 = ssub.s32 %s11, 2
      // Predicated region
      $region49: #{down_forward.1} parent=47 // pred_check
        %p2588 = pneg %p150
      $region50: #{down_forward.1} parent=47 // pred_check_branch
        %2590 = sbr.rel (%p2588) target = $region52
      $region51: #{down_forward.1} parent=47 // pred_region
        %p2591 = scmp.lt.s32.totalorder %s17, 1
        %s2592 = scalar_select %p2591, %s17, 1
        %s2593 = smul.addr %s2592, 8
        %s2594 = smul.addr %s2593, 8
        %s2595 = scalar_lea.vmem %s5, %s2594
      $region52: #{down_forward.1} parent=47 // pred_fallthru
        _
    $region48: #{down_forward.1} parent=5 // pred_fallthru
      _
  $region6: #{down_forward.1} parent=0 // loop_footer
    %s15 = sadd.s32 1, %s11
  $region7: #{down_forward.1} parent=0 // loop_footer_branch
    %10 = sbr.rel target = $region3
  $region8: #{down_forward.1} parent=0 // loop_exit
    _

</llo_original>
